<compile_context>
chip_gen: v7x
topology: tpu7x:2x2x1
jax: 0.10.0
libtpu: 0.0.40
codegen_flags: <defaults>
</compile_context>

<pallas_src>
import functools

import jax
import jax.numpy as jnp
from jax.experimental import pallas as pl
from jax.experimental.pallas import tpu as pltpu


# ----------------------------------------------------------------------------
# Pallas kernel: fused bidirectional, length-masked GRU recurrence.
# Grid = (2 directions [parallel], T // Tc chunks [arbitrary / recurrent]).
# ----------------------------------------------------------------------------
def _bigru_kernel(lens_ref, gi_ref, whh_ref, bhn_ref, out_ref, hfin_ref, h_scr,
                  *, Tc, H, n_chunks):
    d = pl.program_id(0)        # direction: 0 = forward, 1 = backward
    c = pl.program_id(1)        # time chunk index (in processing order)

    @pl.when(c == 0)
    def _():
        h_scr[...] = jnp.zeros_like(h_scr)

    # Hoisted loads (once per grid step, reused by the unrolled inner loop).
    lens_v = lens_ref[...]      # (B, 1) int32
    w_hh = whh_ref[0]           # (H, 3H)   gate order r | z | n
    b_hn = bhn_ref[0]           # (1, H)    hidden bias of the n gate

    def run_chunk(reverse):
        # Global time of the first row of this chunk's block.
        base_t = ((n_chunks - 1 - c) if reverse else c) * Tc
        h = h_scr[...]          # (B, H) carried hidden state
        for j in range(Tc):     # fully unrolled (Tc is a small static int)
            row = (Tc - 1 - j) if reverse else j
            t = base_t + row    # actual timestep processed
            gi = gi_ref[0, row]                                     # (B, 3H)
            gh = jnp.dot(h, w_hh, preferred_element_type=jnp.float32)  # (B, 3H)
            r = jax.nn.sigmoid(gi[:, 0:H] + gh[:, 0:H])
            z = jax.nn.sigmoid(gi[:, H:2 * H] + gh[:, H:2 * H])
            n = jnp.tanh(gi[:, 2 * H:] + r * (gh[:, 2 * H:] + b_hn))
            h_new = (1.0 - z) * n + z * h
            # Packed-sequence masking: only t < len[b] is valid.
            valid = t < lens_v                                      # (B, 1)
            h = jnp.where(valid, h_new, h)
            # pad_packed_sequence zeroes padded output positions.
            out_ref[0, row] = jnp.where(valid, h_new, 0.0).astype(out_ref.dtype)
        h_scr[...] = h

        @pl.when(c == n_chunks - 1)
        def _():
            hfin_ref[0] = h.astype(hfin_ref.dtype)

    @pl.when(d == 0)
    def _():
        run_chunk(False)

    @pl.when(d == 1)
    def _():
        run_chunk(True)


def _pick_chunk(T, target):
    tc = max(1, min(target, T))
    while T % tc != 0:
        tc -= 1
    return tc


# ----------------------------------------------------------------------------
# Encoder forward (glue: embedding gather, hoisted input projection,
# direction concat, hidden mean).
# ----------------------------------------------------------------------------
def encoder_forward(params, src, seq_len, *, time_chunk=4):
    """src: (B, T) int32 token ids; seq_len: (B,) int32 valid lengths."""
    src_id = src.T                                    # (T, B) == transpose(0, -1)
    x = jnp.maximum(params["embedding"][src_id], 0.0)  # ReLU(embedded); dropout=id
    T, B, _ = x.shape
    H = params["w_hh"].shape[-1] // 3

    # Hoisted input projection (one big matmul per direction, MXU-friendly):
    #   gi[d] = ReLU(x) @ W_ih[d] + b_ih[d] + [b_hh_r[d], b_hh_z[d], 0]
    # (b_hh of the n gate must stay inside r * (.) and is passed separately.)
    b_gi = params["b_ih"] + params["b_hh"].at[:, 2 * H:].set(0.0)   # (2, 3H)
    b_hn = params["b_hh"][:, 2 * H:].reshape(2, 1, H)               # (2, 1, H)
    gi = jnp.einsum("tbe,deh->dtbh", x, params["w_ih"]) + b_gi[:, None, None, :]

    Tc = _pick_chunk(T, time_chunk)
    nC = T // Tc
    lens = seq_len.astype(jnp.int32).reshape(B, 1)

    # Time-block index per (direction, chunk): forward walks 0..nC-1,
    # backward walks nC-1..0 (so each direction sees its timesteps in order).
    tb = lambda d, c: c + d * (nC - 1 - 2 * c)

    out, hfin = pl.pallas_call(
        functools.partial(_bigru_kernel, Tc=Tc, H=H, n_chunks=nC),
        out_shape=(
            jax.ShapeDtypeStruct((2, T, B, H), jnp.float32),   # per-direction outputs
            jax.ShapeDtypeStruct((2, B, H), jnp.float32),      # per-direction final h
        ),
        grid_spec=pltpu.PrefetchScalarGridSpec(
            num_scalar_prefetch=0,
            grid=(2, nC),
            in_specs=[
                pl.BlockSpec((B, 1), lambda d, c: (0, 0)),                    # lens
                pl.BlockSpec((1, Tc, B, 3 * H), lambda d, c: (d, tb(d, c), 0, 0)),  # gi chunk
                pl.BlockSpec((1, H, 3 * H), lambda d, c: (d, 0, 0)),          # W_hh[d]
                pl.BlockSpec((1, 1, H), lambda d, c: (d, 0, 0)),              # b_hn[d]
            ],
            out_specs=[
                pl.BlockSpec((1, Tc, B, H), lambda d, c: (d, tb(d, c), 0, 0)),  # outputs
                pl.BlockSpec((1, B, H), lambda d, c: (d, 0, 0)),                # final h
            ],
            scratch_shapes=[pltpu.VMEM((B, H), jnp.float32)],  # carried hidden state
        ),
        compiler_params=pltpu.CompilerParams(
            # direction axis is independent (2 TCs on v7x); chunk axis is the
            # recurrence and must run in order.
            dimension_semantics=("parallel", "arbitrary")),
    )(lens, gi, params["w_hh"], b_hn)

    # Small glue concat (avoiding it would need sub-(8,128) lane-split output
    # blocks, which are unsafe/slow on TPU).
    outputs = jnp.concatenate([out[0], out[1]], axis=-1)   # (T, B, 2H)
    hidden = 0.5 * (hfin[0] + hfin[1])                     # hidden.mean(dim=0)
    return outputs, hidden


# ----------------------------------------------------------------------------
# Pure-JAX reference (for correctness check only).
# ----------------------------------------------------------------------------
def encoder_forward_ref(params, src, seq_len):
    src_id = src.T
    x = jnp.maximum(params["embedding"][src_id], 0.0)
    T, B, _ = x.shape
    H = params["w_hh"].shape[-1] // 3
    lens = seq_len.astype(jnp.int32)

    def run_dir(d, reverse):
        w_ih, w_hh = params["w_ih"][d], params["w_hh"][d]
        b_ih, b_hh = params["b_ih"][d], params["b_hh"][d]

        def step(h, inp):
            xt, t = inp
            gi = xt @ w_ih + b_ih
            gh = h @ w_hh + b_hh
            r = jax.nn.sigmoid(gi[:, :H] + gh[:, :H])
            z = jax.nn.sigmoid(gi[:, H:2 * H] + gh[:, H:2 * H])
            n = jnp.tanh(gi[:, 2 * H:] + r * gh[:, 2 * H:])
            h_new = (1.0 - z) * n + z * h
            valid = (t < lens)[:, None]
            return jnp.where(valid, h_new, h), jnp.where(valid, h_new, 0.0)

        ts = jnp.arange(T)
        xs = x[::-1] if reverse else x
        tss = ts[::-1] if reverse else ts
        h_fin, outs = jax.lax.scan(step, jnp.zeros((B, H), jnp.float32), (xs, tss))
        return (outs[::-1] if reverse else outs), h_fin

    out_f, h_f = run_dir(0, False)
    out_b, h_b = run_dir(1, True)
    return jnp.concatenate([out_f, out_b], axis=-1), 0.5 * (h_f + h_b)


# ----------------------------------------------------------------------------
# Deterministic parameter init (shapes from Encoder.__init__).
# Gate order (r, z, n) concatenated on the last axis; leading dim = direction.
# ----------------------------------------------------------------------------
def init_params(key, input_dim, emb_dim, enc_hid_dim):
    ks = jax.random.split(key, 5)
    s = 1.0 / jnp.sqrt(enc_hid_dim)
    u = lambda k, shape: jax.random.uniform(k, shape, jnp.float32, -s, s)
    return {
        "embedding": jax.random.normal(ks[0], (input_dim, emb_dim), jnp.float32),
        "w_ih": u(ks[1], (2, emb_dim, 3 * enc_hid_dim)),
        "w_hh": u(ks[2], (2, enc_hid_dim, 3 * enc_hid_dim)),
        "b_ih": u(ks[3], (2, 3 * enc_hid_dim)),
        "b_hh": u(ks[4], (2, 3 * enc_hid_dim)),
    }


if __name__ == "__main__":
    input_dim, emb_dim, enc_hid_dim = 50, 16, 32
    B, T = 2, 8

    key = jax.random.PRNGKey(0)
    kp, ks = jax.random.split(key)
    params = init_params(kp, input_dim, emb_dim, enc_hid_dim)

    src = jax.random.randint(ks, (B, T), 0, input_dim, dtype=jnp.int32)
    # max(seq_len) == T so pad_packed_sequence length equals the input seq dim.
    seq_len = jnp.array([T, 5], dtype=jnp.int32)

    fwd = jax.jit(encoder_forward)
    outputs, hidden = jax.block_until_ready(fwd(params, src, seq_len))

    # sanity: shapes + numerics vs pure-JAX reference
    assert outputs.shape == (T, B, 2 * enc_hid_dim)
    assert hidden.shape == (B, enc_hid_dim)
    ref_out, ref_hid = encoder_forward_ref(params, src, seq_len)
    assert jnp.allclose(outputs, ref_out, atol=1e-3, rtol=1e-3), \
        float(jnp.max(jnp.abs(outputs - ref_out)))
    assert jnp.allclose(hidden, ref_hid, atol=1e-3, rtol=1e-3), \
        float(jnp.max(jnp.abs(hidden - ref_hid)))

    print("KERNEL_OK")
</pallas_src>

<mosaic_0001>
module attributes {stable_mosaic.version = 11 : i64} {
  func.func @_bigru_kernel(%arg0: i32, %arg1: i32, %arg2: memref<2x1xi32, #tpu.memory_space<vmem>>, %arg3: memref<1x4x2x96xf32, #tpu.memory_space<vmem>>, %arg4: memref<1x32x96xf32, #tpu.memory_space<vmem>>, %arg5: memref<1x1x32xf32, #tpu.memory_space<vmem>>, %arg6: memref<1x4x2x32xf32, #tpu.memory_space<vmem>>, %arg7: memref<1x2x32xf32, #tpu.memory_space<vmem>>, %arg8: memref<2x32xf32, #tpu.memory_space<vmem>>) attributes {dimension_semantics = [#tpu.dimension_semantics<parallel>, #tpu.dimension_semantics<arbitrary>], iteration_bounds = array<i64: 2, 2>, scalar_prefetch = 0 : i64, scratch_operands = 1 : i64, tpu.core_type = #tpu.core_type<tc>, window_params = [{pipeline_mode = #tpu.pipeline_mode<synchronous>, transform_indices = @transform_0, window_bounds = array<i64: 2, 1>}, {transform_indices = @transform_1, window_bounds = array<i64: 1, 4, 2, 96>}, {transform_indices = @transform_2, window_bounds = array<i64: 1, 32, 96>}, {transform_indices = @transform_3, window_bounds = array<i64: 1, 1, 32>}, {transform_indices = @transform_4, window_bounds = array<i64: 1, 4, 2, 32>}, {transform_indices = @transform_5, window_bounds = array<i64: 1, 2, 32>}]} {
    %c0_i32 = arith.constant 0 : i32
    %0 = arith.cmpi eq, %arg1, %c0_i32 : i32
    %1 = arith.extui %0 : i1 to i32
    %c0_i32_0 = arith.constant 0 : i32
    %2 = arith.cmpi ne, %1, %c0_i32_0 : i32
    scf.if %2 {
      %cst = arith.constant 0.000000e+00 : f32
      %14 = vector.broadcast %cst : f32 to vector<2x32xf32>
      %c0_11 = arith.constant 0 : index
      %c0_12 = arith.constant 0 : index
      %15 = vector.load %arg8[%c0_11, %c0_12] : memref<2x32xf32, #tpu.memory_space<vmem>>, vector<2x32xf32>
      tpu.vector_store %arg8[%c0_11, %c0_12], %14 {strides = array<i32>} : memref<2x32xf32, #tpu.memory_space<vmem>>, vector<2x32xf32>,
    } else {
    }
    %c0 = arith.constant 0 : index
    %c0_1 = arith.constant 0 : index
    %3 = vector.load %arg2[%c0, %c0_1] : memref<2x1xi32, #tpu.memory_space<vmem>>, vector<2x1xi32>
    %c0_2 = arith.constant 0 : index
    %c0_3 = arith.constant 0 : index
    %c0_4 = arith.constant 0 : index
    %4 = vector.load %arg4[%c0_2, %c0_3, %c0_4] : memref<1x32x96xf32, #tpu.memory_space<vmem>>, vector<1x32x96xf32>
    %5 = vector.shape_cast %4 : vector<1x32x96xf32> to vector<32x96xf32>
    %c0_5 = arith.constant 0 : index
    %c0_6 = arith.constant 0 : index
    %c0_7 = arith.constant 0 : index
    %6 = vector.load %arg5[%c0_5, %c0_6, %c0_7] : memref<1x1x32xf32, #tpu.memory_space<vmem>>, vector<1x1x32xf32>
    %7 = vector.shape_cast %6 : vector<1x1x32xf32> to vector<1x32xf32>
    %c0_i32_8 = arith.constant 0 : i32
    %8 = arith.cmpi eq, %arg0, %c0_i32_8 : i32
    %9 = arith.extui %8 : i1 to i32
    %c0_i32_9 = arith.constant 0 : i32
    %10 = arith.cmpi ne, %9, %c0_i32_9 : i32
    scf.if %10 {
      %c4_i32 = arith.constant 4 : i32
      %14 = arith.muli %arg1, %c4_i32 : i32
      %c0_11 = arith.constant 0 : index
      %c0_12 = arith.constant 0 : index
      %15 = vector.load %arg8[%c0_11, %c0_12] : memref<2x32xf32, #tpu.memory_space<vmem>>, vector<2x32xf32>
      %c0_i32_13 = arith.constant 0 : i32
      %16 = arith.addi %14, %c0_i32_13 : i32
      %c0_14 = arith.constant 0 : index
      %c0_15 = arith.constant 0 : index
      %c0_16 = arith.constant 0 : index
      %c0_17 = arith.constant 0 : index
      %17 = vector.load %arg3[%c0_14, %c0_15, %c0_16, %c0_17] : memref<1x4x2x96xf32, #tpu.memory_space<vmem>>, vector<1x1x2x96xf32>
      %18 = vector.shape_cast %17 : vector<1x1x2x96xf32> to vector<2x96xf32>
      %cst = arith.constant dense<0.000000e+00> : vector<2x96xf32>
      %19 = tpu.matmul %15, %5, %cst {dimension_numbers = #tpu.dot_dimension_numbers<[1], [0], [0], [1], [0, 0, 1, 1], [], []>} : vector<2x32xf32>, vector<32x96xf32>, vector<2x96xf32> -> vector<2x96xf32>
      %20 = vector.extract_strided_slice %18 {offsets = [0, 0], sizes = [2, 32], strides = [1, 1]} : vector<2x96xf32> to vector<2x32xf32>
      %21 = vector.extract_strided_slice %19 {offsets = [0, 0], sizes = [2, 32], strides = [1, 1]} : vector<2x96xf32> to vector<2x32xf32>
      %22 = arith.addf %20, %21 : vector<2x32xf32>
      %23 = arith.negf %22 : vector<2x32xf32>
      %24 = math.exp %23 : vector<2x32xf32>
      %cst_18 = arith.constant 1.000000e+00 : f32
      %25 = vector.broadcast %cst_18 : f32 to vector<2x32xf32>
      %26 = arith.addf %25, %24 : vector<2x32xf32>
      %27 = arith.divf %25, %26 : vector<2x32xf32>
      %28 = vector.extract_strided_slice %18 {offsets = [0, 32], sizes = [2, 32], strides = [1, 1]} : vector<2x96xf32> to vector<2x32xf32>
      %29 = vector.extract_strided_slice %19 {offsets = [0, 32], sizes = [2, 32], strides = [1, 1]} : vector<2x96xf32> to vector<2x32xf32>
      %30 = arith.addf %28, %29 : vector<2x32xf32>
      %31 = arith.negf %30 : vector<2x32xf32>
      %32 = math.exp %31 : vector<2x32xf32>
      %cst_19 = arith.constant 1.000000e+00 : f32
      %33 = vector.broadcast %cst_19 : f32 to vector<2x32xf32>
      %34 = arith.addf %33, %32 : vector<2x32xf32>
      %35 = arith.divf %33, %34 : vector<2x32xf32>
      %36 = vector.extract_strided_slice %18 {offsets = [0, 64], sizes = [2, 32], strides = [1, 1]} : vector<2x96xf32> to vector<2x32xf32>
      %37 = vector.extract_strided_slice %19 {offsets = [0, 64], sizes = [2, 32], strides = [1, 1]} : vector<2x96xf32> to vector<2x32xf32>
      %38 = vector.broadcast %7 : vector<1x32xf32> to vector<2x32xf32>
      %39 = arith.addf %37, %38 : vector<2x32xf32>
      %40 = arith.mulf %27, %39 : vector<2x32xf32>
      %41 = arith.addf %36, %40 : vector<2x32xf32>
      %42 = math.tanh %41 : vector<2x32xf32>
      %cst_20 = arith.constant 1.000000e+00 : f32
      %43 = vector.broadcast %cst_20 : f32 to vector<2x32xf32>
      %44 = arith.subf %43, %35 : vector<2x32xf32>
      %45 = arith.mulf %44, %42 : vector<2x32xf32>
      %46 = arith.mulf %35, %15 : vector<2x32xf32>
      %47 = arith.addf %45, %46 : vector<2x32xf32>
      %48 = vector.broadcast %16 : i32 to vector<2x1xi32>
      %49 = arith.cmpi slt, %48, %3 : vector<2x1xi32>
      %50 = vector.shape_cast %49 : vector<2x1xi1> to vector<2x1xi1>
      %51 = vector.broadcast %50 : vector<2x1xi1> to vector<2x32xi1>
      %52 = arith.select %51, %47, %15 : vector<2x32xi1>, vector<2x32xf32>
      %cst_21 = arith.constant 0.000000e+00 : f32
      %53 = vector.shape_cast %49 : vector<2x1xi1> to vector<2x1xi1>
      %54 = vector.broadcast %53 : vector<2x1xi1> to vector<2x32xi1>
      %55 = vector.broadcast %cst_21 : f32 to vector<2x32xf32>
      %56 = arith.select %54, %47, %55 : vector<2x32xi1>, vector<2x32xf32>
      %c0_22 = arith.constant 0 : index
      %c0_23 = arith.constant 0 : index
      %c0_24 = arith.constant 0 : index
      %c0_25 = arith.constant 0 : index
      %57 = vector.load %arg6[%c0_22, %c0_23, %c0_24, %c0_25] : memref<1x4x2x32xf32, #tpu.memory_space<vmem>>, vector<1x1x2x32xf32>
      %58 = vector.shape_cast %57 : vector<1x1x2x32xf32> to vector<2x32xf32>
      %59 = vector.shape_cast %56 : vector<2x32xf32> to vector<1x1x2x32xf32>
      tpu.vector_store %arg6[%c0_22, %c0_23, %c0_24, %c0_25], %59 {strides = array<i32>} : memref<1x4x2x32xf32, #tpu.memory_space<vmem>>, vector<1x1x2x32xf32>,
      %c1_i32_26 = arith.constant 1 : i32
      %60 = arith.addi %14, %c1_i32_26 : i32
      %c0_27 = arith.constant 0 : index
      %c1 = arith.constant 1 : index
      %c0_28 = arith.constant 0 : index
      %c0_29 = arith.constant 0 : index
      %61 = vector.load %arg3[%c0_27, %c1, %c0_28, %c0_29] : memref<1x4x2x96xf32, #tpu.memory_space<vmem>>, vector<1x1x2x96xf32>
      %62 = vector.shape_cast %61 : vector<1x1x2x96xf32> to vector<2x96xf32>
      %cst_30 = arith.constant dense<0.000000e+00> : vector<2x96xf32>
      %63 = tpu.matmul %52, %5, %cst_30 {dimension_numbers = #tpu.dot_dimension_numbers<[1], [0], [0], [1], [0, 0, 1, 1], [], []>} : vector<2x32xf32>, vector<32x96xf32>, vector<2x96xf32> -> vector<2x96xf32>
      %64 = vector.extract_strided_slice %62 {offsets = [0, 0], sizes = [2, 32], strides = [1, 1]} : vector<2x96xf32> to vector<2x32xf32>
      %65 = vector.extract_strided_slice %63 {offsets = [0, 0], sizes = [2, 32], strides = [1, 1]} : vector<2x96xf32> to vector<2x32xf32>
      %66 = arith.addf %64, %65 : vector<2x32xf32>
      %67 = arith.negf %66 : vector<2x32xf32>
      %68 = math.exp %67 : vector<2x32xf32>
      %cst_31 = arith.constant 1.000000e+00 : f32
      %69 = vector.broadcast %cst_31 : f32 to vector<2x32xf32>
      %70 = arith.addf %69, %68 : vector<2x32xf32>
      %71 = arith.divf %69, %70 : vector<2x32xf32>
      %72 = vector.extract_strided_slice %62 {offsets = [0, 32], sizes = [2, 32], strides = [1, 1]} : vector<2x96xf32> to vector<2x32xf32>
      %73 = vector.extract_strided_slice %63 {offsets = [0, 32], sizes = [2, 32], strides = [1, 1]} : vector<2x96xf32> to vector<2x32xf32>
      %74 = arith.addf %72, %73 : vector<2x32xf32>
      %75 = arith.negf %74 : vector<2x32xf32>
      %76 = math.exp %75 : vector<2x32xf32>
      %cst_32 = arith.constant 1.000000e+00 : f32
      %77 = vector.broadcast %cst_32 : f32 to vector<2x32xf32>
      %78 = arith.addf %77, %76 : vector<2x32xf32>
      %79 = arith.divf %77, %78 : vector<2x32xf32>
      %80 = vector.extract_strided_slice %62 {offsets = [0, 64], sizes = [2, 32], strides = [1, 1]} : vector<2x96xf32> to vector<2x32xf32>
      %81 = vector.extract_strided_slice %63 {offsets = [0, 64], sizes = [2, 32], strides = [1, 1]} : vector<2x96xf32> to vector<2x32xf32>
      %82 = vector.broadcast %7 : vector<1x32xf32> to vector<2x32xf32>
      %83 = arith.addf %81, %82 : vector<2x32xf32>
      %84 = arith.mulf %71, %83 : vector<2x32xf32>
      %85 = arith.addf %80, %84 : vector<2x32xf32>
      %86 = math.tanh %85 : vector<2x32xf32>
      %cst_33 = arith.constant 1.000000e+00 : f32
      %87 = vector.broadcast %cst_33 : f32 to vector<2x32xf32>
      %88 = arith.subf %87, %79 : vector<2x32xf32>
      %89 = arith.mulf %88, %86 : vector<2x32xf32>
      %90 = arith.mulf %79, %52 : vector<2x32xf32>
      %91 = arith.addf %89, %90 : vector<2x32xf32>
      %92 = vector.broadcast %60 : i32 to vector<2x1xi32>
      %93 = arith.cmpi slt, %92, %3 : vector<2x1xi32>
      %94 = vector.shape_cast %93 : vector<2x1xi1> to vector<2x1xi1>
      %95 = vector.broadcast %94 : vector<2x1xi1> to vector<2x32xi1>
      %96 = arith.select %95, %91, %52 : vector<2x32xi1>, vector<2x32xf32>
      %cst_34 = arith.constant 0.000000e+00 : f32
      %97 = vector.shape_cast %93 : vector<2x1xi1> to vector<2x1xi1>
      %98 = vector.broadcast %97 : vector<2x1xi1> to vector<2x32xi1>
      %99 = vector.broadcast %cst_34 : f32 to vector<2x32xf32>
      %100 = arith.select %98, %91, %99 : vector<2x32xi1>, vector<2x32xf32>
      %c0_35 = arith.constant 0 : index
      %c1_36 = arith.constant 1 : index
      %c0_37 = arith.constant 0 : index
      %c0_38 = arith.constant 0 : index
      %101 = vector.load %arg6[%c0_35, %c1_36, %c0_37, %c0_38] : memref<1x4x2x32xf32, #tpu.memory_space<vmem>>, vector<1x1x2x32xf32>
      %102 = vector.shape_cast %101 : vector<1x1x2x32xf32> to vector<2x32xf32>
      %103 = vector.shape_cast %100 : vector<2x32xf32> to vector<1x1x2x32xf32>
      tpu.vector_store %arg6[%c0_35, %c1_36, %c0_37, %c0_38], %103 {strides = array<i32>} : memref<1x4x2x32xf32, #tpu.memory_space<vmem>>, vector<1x1x2x32xf32>,
      %c2_i32 = arith.constant 2 : i32
      %104 = arith.addi %14, %c2_i32 : i32
      %c0_39 = arith.constant 0 : index
      %c2 = arith.constant 2 : index
      %c0_40 = arith.constant 0 : index
      %c0_41 = arith.constant 0 : index
      %105 = vector.load %arg3[%c0_39, %c2, %c0_40, %c0_41] : memref<1x4x2x96xf32, #tpu.memory_space<vmem>>, vector<1x1x2x96xf32>
      %106 = vector.shape_cast %105 : vector<1x1x2x96xf32> to vector<2x96xf32>
      %cst_42 = arith.constant dense<0.000000e+00> : vector<2x96xf32>
      %107 = tpu.matmul %96, %5, %cst_42 {dimension_numbers = #tpu.dot_dimension_numbers<[1], [0], [0], [1], [0, 0, 1, 1], [], []>} : vector<2x32xf32>, vector<32x96xf32>, vector<2x96xf32> -> vector<2x96xf32>
      %108 = vector.extract_strided_slice %106 {offsets = [0, 0], sizes = [2, 32], strides = [1, 1]} : vector<2x96xf32> to vector<2x32xf32>
      %109 = vector.extract_strided_slice %107 {offsets = [0, 0], sizes = [2, 32], strides = [1, 1]} : vector<2x96xf32> to vector<2x32xf32>
      %110 = arith.addf %108, %109 : vector<2x32xf32>
      %111 = arith.negf %110 : vector<2x32xf32>
      %112 = math.exp %111 : vector<2x32xf32>
      %cst_43 = arith.constant 1.000000e+00 : f32
      %113 = vector.broadcast %cst_43 : f32 to vector<2x32xf32>
      %114 = arith.addf %113, %112 : vector<2x32xf32>
      %115 = arith.divf %113, %114 : vector<2x32xf32>
      %116 = vector.extract_strided_slice %106 {offsets = [0, 32], sizes = [2, 32], strides = [1, 1]} : vector<2x96xf32> to vector<2x32xf32>
      %117 = vector.extract_strided_slice %107 {offsets = [0, 32], sizes = [2, 32], strides = [1, 1]} : vector<2x96xf32> to vector<2x32xf32>
      %118 = arith.addf %116, %117 : vector<2x32xf32>
      %119 = arith.negf %118 : vector<2x32xf32>
      %120 = math.exp %119 : vector<2x32xf32>
      %cst_44 = arith.constant 1.000000e+00 : f32
      %121 = vector.broadcast %cst_44 : f32 to vector<2x32xf32>
      %122 = arith.addf %121, %120 : vector<2x32xf32>
      %123 = arith.divf %121, %122 : vector<2x32xf32>
      %124 = vector.extract_strided_slice %106 {offsets = [0, 64], sizes = [2, 32], strides = [1, 1]} : vector<2x96xf32> to vector<2x32xf32>
      %125 = vector.extract_strided_slice %107 {offsets = [0, 64], sizes = [2, 32], strides = [1, 1]} : vector<2x96xf32> to vector<2x32xf32>
      %126 = vector.broadcast %7 : vector<1x32xf32> to vector<2x32xf32>
      %127 = arith.addf %125, %126 : vector<2x32xf32>
      %128 = arith.mulf %115, %127 : vector<2x32xf32>
      %129 = arith.addf %124, %128 : vector<2x32xf32>
      %130 = math.tanh %129 : vector<2x32xf32>
      %cst_45 = arith.constant 1.000000e+00 : f32
      %131 = vector.broadcast %cst_45 : f32 to vector<2x32xf32>
      %132 = arith.subf %131, %123 : vector<2x32xf32>
      %133 = arith.mulf %132, %130 : vector<2x32xf32>
      %134 = arith.mulf %123, %96 : vector<2x32xf32>
      %135 = arith.addf %133, %134 : vector<2x32xf32>
      %136 = vector.broadcast %104 : i32 to vector<2x1xi32>
      %137 = arith.cmpi slt, %136, %3 : vector<2x1xi32>
      %138 = vector.shape_cast %137 : vector<2x1xi1> to vector<2x1xi1>
      %139 = vector.broadcast %138 : vector<2x1xi1> to vector<2x32xi1>
      %140 = arith.select %139, %135, %96 : vector<2x32xi1>, vector<2x32xf32>
      %cst_46 = arith.constant 0.000000e+00 : f32
      %141 = vector.shape_cast %137 : vector<2x1xi1> to vector<2x1xi1>
      %142 = vector.broadcast %141 : vector<2x1xi1> to vector<2x32xi1>
      %143 = vector.broadcast %cst_46 : f32 to vector<2x32xf32>
      %144 = arith.select %142, %135, %143 : vector<2x32xi1>, vector<2x32xf32>
      %c0_47 = arith.constant 0 : index
      %c2_48 = arith.constant 2 : index
      %c0_49 = arith.constant 0 : index
      %c0_50 = arith.constant 0 : index
      %145 = vector.load %arg6[%c0_47, %c2_48, %c0_49, %c0_50] : memref<1x4x2x32xf32, #tpu.memory_space<vmem>>, vector<1x1x2x32xf32>
      %146 = vector.shape_cast %145 : vector<1x1x2x32xf32> to vector<2x32xf32>
      %147 = vector.shape_cast %144 : vector<2x32xf32> to vector<1x1x2x32xf32>
      tpu.vector_store %arg6[%c0_47, %c2_48, %c0_49, %c0_50], %147 {strides = array<i32>} : memref<1x4x2x32xf32, #tpu.memory_space<vmem>>, vector<1x1x2x32xf32>,
      %c3_i32 = arith.constant 3 : i32
      %148 = arith.addi %14, %c3_i32 : i32
      %c0_51 = arith.constant 0 : index
      %c3 = arith.constant 3 : index
      %c0_52 = arith.constant 0 : index
      %c0_53 = arith.constant 0 : index
      %149 = vector.load %arg3[%c0_51, %c3, %c0_52, %c0_53] : memref<1x4x2x96xf32, #tpu.memory_space<vmem>>, vector<1x1x2x96xf32>
      %150 = vector.shape_cast %149 : vector<1x1x2x96xf32> to vector<2x96xf32>
      %cst_54 = arith.constant dense<0.000000e+00> : vector<2x96xf32>
      %151 = tpu.matmul %140, %5, %cst_54 {dimension_numbers = #tpu.dot_dimension_numbers<[1], [0], [0], [1], [0, 0, 1, 1], [], []>} : vector<2x32xf32>, vector<32x96xf32>, vector<2x96xf32> -> vector<2x96xf32>
      %152 = vector.extract_strided_slice %150 {offsets = [0, 0], sizes = [2, 32], strides = [1, 1]} : vector<2x96xf32> to vector<2x32xf32>
      %153 = vector.extract_strided_slice %151 {offsets = [0, 0], sizes = [2, 32], strides = [1, 1]} : vector<2x96xf32> to vector<2x32xf32>
      %154 = arith.addf %152, %153 : vector<2x32xf32>
      %155 = arith.negf %154 : vector<2x32xf32>
      %156 = math.exp %155 : vector<2x32xf32>
      %cst_55 = arith.constant 1.000000e+00 : f32
      %157 = vector.broadcast %cst_55 : f32 to vector<2x32xf32>
      %158 = arith.addf %157, %156 : vector<2x32xf32>
      %159 = arith.divf %157, %158 : vector<2x32xf32>
      %160 = vector.extract_strided_slice %150 {offsets = [0, 32], sizes = [2, 32], strides = [1, 1]} : vector<2x96xf32> to vector<2x32xf32>
      %161 = vector.extract_strided_slice %151 {offsets = [0, 32], sizes = [2, 32], strides = [1, 1]} : vector<2x96xf32> to vector<2x32xf32>
      %162 = arith.addf %160, %161 : vector<2x32xf32>
      %163 = arith.negf %162 : vector<2x32xf32>
      %164 = math.exp %163 : vector<2x32xf32>
      %cst_56 = arith.constant 1.000000e+00 : f32
      %165 = vector.broadcast %cst_56 : f32 to vector<2x32xf32>
      %166 = arith.addf %165, %164 : vector<2x32xf32>
      %167 = arith.divf %165, %166 : vector<2x32xf32>
      %168 = vector.extract_strided_slice %150 {offsets = [0, 64], sizes = [2, 32], strides = [1, 1]} : vector<2x96xf32> to vector<2x32xf32>
      %169 = vector.extract_strided_slice %151 {offsets = [0, 64], sizes = [2, 32], strides = [1, 1]} : vector<2x96xf32> to vector<2x32xf32>
      %170 = vector.broadcast %7 : vector<1x32xf32> to vector<2x32xf32>
      %171 = arith.addf %169, %170 : vector<2x32xf32>
      %172 = arith.mulf %159, %171 : vector<2x32xf32>
      %173 = arith.addf %168, %172 : vector<2x32xf32>
      %174 = math.tanh %173 : vector<2x32xf32>
      %cst_57 = arith.constant 1.000000e+00 : f32
      %175 = vector.broadcast %cst_57 : f32 to vector<2x32xf32>
      %176 = arith.subf %175, %167 : vector<2x32xf32>
      %177 = arith.mulf %176, %174 : vector<2x32xf32>
      %178 = arith.mulf %167, %140 : vector<2x32xf32>
      %179 = arith.addf %177, %178 : vector<2x32xf32>
      %180 = vector.broadcast %148 : i32 to vector<2x1xi32>
      %181 = arith.cmpi slt, %180, %3 : vector<2x1xi32>
      %182 = vector.shape_cast %181 : vector<2x1xi1> to vector<2x1xi1>
      %183 = vector.broadcast %182 : vector<2x1xi1> to vector<2x32xi1>
      %184 = arith.select %183, %179, %140 : vector<2x32xi1>, vector<2x32xf32>
      %cst_58 = arith.constant 0.000000e+00 : f32
      %185 = vector.shape_cast %181 : vector<2x1xi1> to vector<2x1xi1>
      %186 = vector.broadcast %185 : vector<2x1xi1> to vector<2x32xi1>
      %187 = vector.broadcast %cst_58 : f32 to vector<2x32xf32>
      %188 = arith.select %186, %179, %187 : vector<2x32xi1>, vector<2x32xf32>
      %c0_59 = arith.constant 0 : index
      %c3_60 = arith.constant 3 : index
      %c0_61 = arith.constant 0 : index
      %c0_62 = arith.constant 0 : index
      %189 = vector.load %arg6[%c0_59, %c3_60, %c0_61, %c0_62] : memref<1x4x2x32xf32, #tpu.memory_space<vmem>>, vector<1x1x2x32xf32>
      %190 = vector.shape_cast %189 : vector<1x1x2x32xf32> to vector<2x32xf32>
      %191 = vector.shape_cast %188 : vector<2x32xf32> to vector<1x1x2x32xf32>
      tpu.vector_store %arg6[%c0_59, %c3_60, %c0_61, %c0_62], %191 {strides = array<i32>} : memref<1x4x2x32xf32, #tpu.memory_space<vmem>>, vector<1x1x2x32xf32>,
      %c0_63 = arith.constant 0 : index
      %c0_64 = arith.constant 0 : index
      %192 = vector.load %arg8[%c0_63, %c0_64] : memref<2x32xf32, #tpu.memory_space<vmem>>, vector<2x32xf32>
      tpu.vector_store %arg8[%c0_63, %c0_64], %184 {strides = array<i32>} : memref<2x32xf32, #tpu.memory_space<vmem>>, vector<2x32xf32>,
      %c1_i32_65 = arith.constant 1 : i32
      %193 = arith.cmpi eq, %arg1, %c1_i32_65 : i32
      %194 = arith.extui %193 : i1 to i32
      %c0_i32_66 = arith.constant 0 : i32
      %195 = arith.cmpi ne, %194, %c0_i32_66 : i32
      scf.if %195 {
        %c0_67 = arith.constant 0 : index
        %c0_68 = arith.constant 0 : index
        %c0_69 = arith.constant 0 : index
        %196 = vector.load %arg7[%c0_67, %c0_68, %c0_69] : memref<1x2x32xf32, #tpu.memory_space<vmem>>, vector<1x2x32xf32>
        %197 = vector.shape_cast %196 : vector<1x2x32xf32> to vector<2x32xf32>
        %198 = vector.shape_cast %184 : vector<2x32xf32> to vector<1x2x32xf32>
        tpu.vector_store %arg7[%c0_67, %c0_68, %c0_69], %198 {strides = array<i32>} : memref<1x2x32xf32, #tpu.memory_space<vmem>>, vector<1x2x32xf32>,
      } else {
      }
    } else {
    }
    %c1_i32 = arith.constant 1 : i32
    %11 = arith.cmpi eq, %arg0, %c1_i32 : i32
    %12 = arith.extui %11 : i1 to i32
    %c0_i32_10 = arith.constant 0 : i32
    %13 = arith.cmpi ne, %12, %c0_i32_10 : i32
    scf.if %13 {
      %c1_i32_11 = arith.constant 1 : i32
      %14 = arith.subi %c1_i32_11, %arg1 : i32
      %c4_i32 = arith.constant 4 : i32
      %15 = arith.muli %14, %c4_i32 : i32
      %c0_12 = arith.constant 0 : index
      %c0_13 = arith.constant 0 : index
      %16 = vector.load %arg8[%c0_12, %c0_13] : memref<2x32xf32, #tpu.memory_space<vmem>>, vector<2x32xf32>
      %c3_i32 = arith.constant 3 : i32
      %17 = arith.addi %15, %c3_i32 : i32
      %c0_14 = arith.constant 0 : index
      %c3 = arith.constant 3 : index
      %c0_15 = arith.constant 0 : index
      %c0_16 = arith.constant 0 : index
      %18 = vector.load %arg3[%c0_14, %c3, %c0_15, %c0_16] : memref<1x4x2x96xf32, #tpu.memory_space<vmem>>, vector<1x1x2x96xf32>
      %19 = vector.shape_cast %18 : vector<1x1x2x96xf32> to vector<2x96xf32>
      %cst = arith.constant dense<0.000000e+00> : vector<2x96xf32>
      %20 = tpu.matmul %16, %5, %cst {dimension_numbers = #tpu.dot_dimension_numbers<[1], [0], [0], [1], [0, 0, 1, 1], [], []>} : vector<2x32xf32>, vector<32x96xf32>, vector<2x96xf32> -> vector<2x96xf32>
      %21 = vector.extract_strided_slice %19 {offsets = [0, 0], sizes = [2, 32], strides = [1, 1]} : vector<2x96xf32> to vector<2x32xf32>
      %22 = vector.extract_strided_slice %20 {offsets = [0, 0], sizes = [2, 32], strides = [1, 1]} : vector<2x96xf32> to vector<2x32xf32>
      %23 = arith.addf %21, %22 : vector<2x32xf32>
      %24 = arith.negf %23 : vector<2x32xf32>
      %25 = math.exp %24 : vector<2x32xf32>
      %cst_17 = arith.constant 1.000000e+00 : f32
      %26 = vector.broadcast %cst_17 : f32 to vector<2x32xf32>
      %27 = arith.addf %26, %25 : vector<2x32xf32>
      %28 = arith.divf %26, %27 : vector<2x32xf32>
      %29 = vector.extract_strided_slice %19 {offsets = [0, 32], sizes = [2, 32], strides = [1, 1]} : vector<2x96xf32> to vector<2x32xf32>
      %30 = vector.extract_strided_slice %20 {offsets = [0, 32], sizes = [2, 32], strides = [1, 1]} : vector<2x96xf32> to vector<2x32xf32>
      %31 = arith.addf %29, %30 : vector<2x32xf32>
      %32 = arith.negf %31 : vector<2x32xf32>
      %33 = math.exp %32 : vector<2x32xf32>
      %cst_18 = arith.constant 1.000000e+00 : f32
      %34 = vector.broadcast %cst_18 : f32 to vector<2x32xf32>
      %35 = arith.addf %34, %33 : vector<2x32xf32>
      %36 = arith.divf %34, %35 : vector<2x32xf32>
      %37 = vector.extract_strided_slice %19 {offsets = [0, 64], sizes = [2, 32], strides = [1, 1]} : vector<2x96xf32> to vector<2x32xf32>
      %38 = vector.extract_strided_slice %20 {offsets = [0, 64], sizes = [2, 32], strides = [1, 1]} : vector<2x96xf32> to vector<2x32xf32>
      %39 = vector.broadcast %7 : vector<1x32xf32> to vector<2x32xf32>
      %40 = arith.addf %38, %39 : vector<2x32xf32>
      %41 = arith.mulf %28, %40 : vector<2x32xf32>
      %42 = arith.addf %37, %41 : vector<2x32xf32>
      %43 = math.tanh %42 : vector<2x32xf32>
      %cst_19 = arith.constant 1.000000e+00 : f32
      %44 = vector.broadcast %cst_19 : f32 to vector<2x32xf32>
      %45 = arith.subf %44, %36 : vector<2x32xf32>
      %46 = arith.mulf %45, %43 : vector<2x32xf32>
      %47 = arith.mulf %36, %16 : vector<2x32xf32>
      %48 = arith.addf %46, %47 : vector<2x32xf32>
      %49 = vector.broadcast %17 : i32 to vector<2x1xi32>
      %50 = arith.cmpi slt, %49, %3 : vector<2x1xi32>
      %51 = vector.shape_cast %50 : vector<2x1xi1> to vector<2x1xi1>
      %52 = vector.broadcast %51 : vector<2x1xi1> to vector<2x32xi1>
      %53 = arith.select %52, %48, %16 : vector<2x32xi1>, vector<2x32xf32>
      %cst_20 = arith.constant 0.000000e+00 : f32
      %54 = vector.shape_cast %50 : vector<2x1xi1> to vector<2x1xi1>
      %55 = vector.broadcast %54 : vector<2x1xi1> to vector<2x32xi1>
      %56 = vector.broadcast %cst_20 : f32 to vector<2x32xf32>
      %57 = arith.select %55, %48, %56 : vector<2x32xi1>, vector<2x32xf32>
      %c0_21 = arith.constant 0 : index
      %c3_22 = arith.constant 3 : index
      %c0_23 = arith.constant 0 : index
      %c0_24 = arith.constant 0 : index
      %58 = vector.load %arg6[%c0_21, %c3_22, %c0_23, %c0_24] : memref<1x4x2x32xf32, #tpu.memory_space<vmem>>, vector<1x1x2x32xf32>
      %59 = vector.shape_cast %58 : vector<1x1x2x32xf32> to vector<2x32xf32>
      %60 = vector.shape_cast %57 : vector<2x32xf32> to vector<1x1x2x32xf32>
      tpu.vector_store %arg6[%c0_21, %c3_22, %c0_23, %c0_24], %60 {strides = array<i32>} : memref<1x4x2x32xf32, #tpu.memory_space<vmem>>, vector<1x1x2x32xf32>,
      %c2_i32 = arith.constant 2 : i32
      %61 = arith.addi %15, %c2_i32 : i32
      %c0_25 = arith.constant 0 : index
      %c2 = arith.constant 2 : index
      %c0_26 = arith.constant 0 : index
      %c0_27 = arith.constant 0 : index
      %62 = vector.load %arg3[%c0_25, %c2, %c0_26, %c0_27] : memref<1x4x2x96xf32, #tpu.memory_space<vmem>>, vector<1x1x2x96xf32>
      %63 = vector.shape_cast %62 : vector<1x1x2x96xf32> to vector<2x96xf32>
      %cst_28 = arith.constant dense<0.000000e+00> : vector<2x96xf32>
      %64 = tpu.matmul %53, %5, %cst_28 {dimension_numbers = #tpu.dot_dimension_numbers<[1], [0], [0], [1], [0, 0, 1, 1], [], []>} : vector<2x32xf32>, vector<32x96xf32>, vector<2x96xf32> -> vector<2x96xf32>
      %65 = vector.extract_strided_slice %63 {offsets = [0, 0], sizes = [2, 32], strides = [1, 1]} : vector<2x96xf32> to vector<2x32xf32>
      %66 = vector.extract_strided_slice %64 {offsets = [0, 0], sizes = [2, 32], strides = [1, 1]} : vector<2x96xf32> to vector<2x32xf32>
      %67 = arith.addf %65, %66 : vector<2x32xf32>
      %68 = arith.negf %67 : vector<2x32xf32>
      %69 = math.exp %68 : vector<2x32xf32>
      %cst_29 = arith.constant 1.000000e+00 : f32
      %70 = vector.broadcast %cst_29 : f32 to vector<2x32xf32>
      %71 = arith.addf %70, %69 : vector<2x32xf32>
      %72 = arith.divf %70, %71 : vector<2x32xf32>
      %73 = vector.extract_strided_slice %63 {offsets = [0, 32], sizes = [2, 32], strides = [1, 1]} : vector<2x96xf32> to vector<2x32xf32>
      %74 = vector.extract_strided_slice %64 {offsets = [0, 32], sizes = [2, 32], strides = [1, 1]} : vector<2x96xf32> to vector<2x32xf32>
      %75 = arith.addf %73, %74 : vector<2x32xf32>
      %76 = arith.negf %75 : vector<2x32xf32>
      %77 = math.exp %76 : vector<2x32xf32>
      %cst_30 = arith.constant 1.000000e+00 : f32
      %78 = vector.broadcast %cst_30 : f32 to vector<2x32xf32>
      %79 = arith.addf %78, %77 : vector<2x32xf32>
      %80 = arith.divf %78, %79 : vector<2x32xf32>
      %81 = vector.extract_strided_slice %63 {offsets = [0, 64], sizes = [2, 32], strides = [1, 1]} : vector<2x96xf32> to vector<2x32xf32>
      %82 = vector.extract_strided_slice %64 {offsets = [0, 64], sizes = [2, 32], strides = [1, 1]} : vector<2x96xf32> to vector<2x32xf32>
      %83 = vector.broadcast %7 : vector<1x32xf32> to vector<2x32xf32>
      %84 = arith.addf %82, %83 : vector<2x32xf32>
      %85 = arith.mulf %72, %84 : vector<2x32xf32>
      %86 = arith.addf %81, %85 : vector<2x32xf32>
      %87 = math.tanh %86 : vector<2x32xf32>
      %cst_31 = arith.constant 1.000000e+00 : f32
      %88 = vector.broadcast %cst_31 : f32 to vector<2x32xf32>
      %89 = arith.subf %88, %80 : vector<2x32xf32>
      %90 = arith.mulf %89, %87 : vector<2x32xf32>
      %91 = arith.mulf %80, %53 : vector<2x32xf32>
      %92 = arith.addf %90, %91 : vector<2x32xf32>
      %93 = vector.broadcast %61 : i32 to vector<2x1xi32>
      %94 = arith.cmpi slt, %93, %3 : vector<2x1xi32>
      %95 = vector.shape_cast %94 : vector<2x1xi1> to vector<2x1xi1>
      %96 = vector.broadcast %95 : vector<2x1xi1> to vector<2x32xi1>
      %97 = arith.select %96, %92, %53 : vector<2x32xi1>, vector<2x32xf32>
      %cst_32 = arith.constant 0.000000e+00 : f32
      %98 = vector.shape_cast %94 : vector<2x1xi1> to vector<2x1xi1>
      %99 = vector.broadcast %98 : vector<2x1xi1> to vector<2x32xi1>
      %100 = vector.broadcast %cst_32 : f32 to vector<2x32xf32>
      %101 = arith.select %99, %92, %100 : vector<2x32xi1>, vector<2x32xf32>
      %c0_33 = arith.constant 0 : index
      %c2_34 = arith.constant 2 : index
      %c0_35 = arith.constant 0 : index
      %c0_36 = arith.constant 0 : index
      %102 = vector.load %arg6[%c0_33, %c2_34, %c0_35, %c0_36] : memref<1x4x2x32xf32, #tpu.memory_space<vmem>>, vector<1x1x2x32xf32>
      %103 = vector.shape_cast %102 : vector<1x1x2x32xf32> to vector<2x32xf32>
      %104 = vector.shape_cast %101 : vector<2x32xf32> to vector<1x1x2x32xf32>
      tpu.vector_store %arg6[%c0_33, %c2_34, %c0_35, %c0_36], %104 {strides = array<i32>} : memref<1x4x2x32xf32, #tpu.memory_space<vmem>>, vector<1x1x2x32xf32>,
      %c1_i32_37 = arith.constant 1 : i32
      %105 = arith.addi %15, %c1_i32_37 : i32
      %c0_38 = arith.constant 0 : index
      %c1 = arith.constant 1 : index
      %c0_39 = arith.constant 0 : index
      %c0_40 = arith.constant 0 : index
      %106 = vector.load %arg3[%c0_38, %c1, %c0_39, %c0_40] : memref<1x4x2x96xf32, #tpu.memory_space<vmem>>, vector<1x1x2x96xf32>
      %107 = vector.shape_cast %106 : vector<1x1x2x96xf32> to vector<2x96xf32>
      %cst_41 = arith.constant dense<0.000000e+00> : vector<2x96xf32>
      %108 = tpu.matmul %97, %5, %cst_41 {dimension_numbers = #tpu.dot_dimension_numbers<[1], [0], [0], [1], [0, 0, 1, 1], [], []>} : vector<2x32xf32>, vector<32x96xf32>, vector<2x96xf32> -> vector<2x96xf32>
      %109 = vector.extract_strided_slice %107 {offsets = [0, 0], sizes = [2, 32], strides = [1, 1]} : vector<2x96xf32> to vector<2x32xf32>
      %110 = vector.extract_strided_slice %108 {offsets = [0, 0], sizes = [2, 32], strides = [1, 1]} : vector<2x96xf32> to vector<2x32xf32>
      %111 = arith.addf %109, %110 : vector<2x32xf32>
      %112 = arith.negf %111 : vector<2x32xf32>
      %113 = math.exp %112 : vector<2x32xf32>
      %cst_42 = arith.constant 1.000000e+00 : f32
      %114 = vector.broadcast %cst_42 : f32 to vector<2x32xf32>
      %115 = arith.addf %114, %113 : vector<2x32xf32>
      %116 = arith.divf %114, %115 : vector<2x32xf32>
      %117 = vector.extract_strided_slice %107 {offsets = [0, 32], sizes = [2, 32], strides = [1, 1]} : vector<2x96xf32> to vector<2x32xf32>
      %118 = vector.extract_strided_slice %108 {offsets = [0, 32], sizes = [2, 32], strides = [1, 1]} : vector<2x96xf32> to vector<2x32xf32>
      %119 = arith.addf %117, %118 : vector<2x32xf32>
      %120 = arith.negf %119 : vector<2x32xf32>
      %121 = math.exp %120 : vector<2x32xf32>
      %cst_43 = arith.constant 1.000000e+00 : f32
      %122 = vector.broadcast %cst_43 : f32 to vector<2x32xf32>
      %123 = arith.addf %122, %121 : vector<2x32xf32>
      %124 = arith.divf %122, %123 : vector<2x32xf32>
      %125 = vector.extract_strided_slice %107 {offsets = [0, 64], sizes = [2, 32], strides = [1, 1]} : vector<2x96xf32> to vector<2x32xf32>
      %126 = vector.extract_strided_slice %108 {offsets = [0, 64], sizes = [2, 32], strides = [1, 1]} : vector<2x96xf32> to vector<2x32xf32>
      %127 = vector.broadcast %7 : vector<1x32xf32> to vector<2x32xf32>
      %128 = arith.addf %126, %127 : vector<2x32xf32>
      %129 = arith.mulf %116, %128 : vector<2x32xf32>
      %130 = arith.addf %125, %129 : vector<2x32xf32>
      %131 = math.tanh %130 : vector<2x32xf32>
      %cst_44 = arith.constant 1.000000e+00 : f32
      %132 = vector.broadcast %cst_44 : f32 to vector<2x32xf32>
      %133 = arith.subf %132, %124 : vector<2x32xf32>
      %134 = arith.mulf %133, %131 : vector<2x32xf32>
      %135 = arith.mulf %124, %97 : vector<2x32xf32>
      %136 = arith.addf %134, %135 : vector<2x32xf32>
      %137 = vector.broadcast %105 : i32 to vector<2x1xi32>
      %138 = arith.cmpi slt, %137, %3 : vector<2x1xi32>
      %139 = vector.shape_cast %138 : vector<2x1xi1> to vector<2x1xi1>
      %140 = vector.broadcast %139 : vector<2x1xi1> to vector<2x32xi1>
      %141 = arith.select %140, %136, %97 : vector<2x32xi1>, vector<2x32xf32>
      %cst_45 = arith.constant 0.000000e+00 : f32
      %142 = vector.shape_cast %138 : vector<2x1xi1> to vector<2x1xi1>
      %143 = vector.broadcast %142 : vector<2x1xi1> to vector<2x32xi1>
      %144 = vector.broadcast %cst_45 : f32 to vector<2x32xf32>
      %145 = arith.select %143, %136, %144 : vector<2x32xi1>, vector<2x32xf32>
      %c0_46 = arith.constant 0 : index
      %c1_47 = arith.constant 1 : index
      %c0_48 = arith.constant 0 : index
      %c0_49 = arith.constant 0 : index
      %146 = vector.load %arg6[%c0_46, %c1_47, %c0_48, %c0_49] : memref<1x4x2x32xf32, #tpu.memory_space<vmem>>, vector<1x1x2x32xf32>
      %147 = vector.shape_cast %146 : vector<1x1x2x32xf32> to vector<2x32xf32>
      %148 = vector.shape_cast %145 : vector<2x32xf32> to vector<1x1x2x32xf32>
      tpu.vector_store %arg6[%c0_46, %c1_47, %c0_48, %c0_49], %148 {strides = array<i32>} : memref<1x4x2x32xf32, #tpu.memory_space<vmem>>, vector<1x1x2x32xf32>,
      %c0_i32_50 = arith.constant 0 : i32
      %149 = arith.addi %15, %c0_i32_50 : i32
      %c0_51 = arith.constant 0 : index
      %c0_52 = arith.constant 0 : index
      %c0_53 = arith.constant 0 : index
      %c0_54 = arith.constant 0 : index
      %150 = vector.load %arg3[%c0_51, %c0_52, %c0_53, %c0_54] : memref<1x4x2x96xf32, #tpu.memory_space<vmem>>, vector<1x1x2x96xf32>
      %151 = vector.shape_cast %150 : vector<1x1x2x96xf32> to vector<2x96xf32>
      %cst_55 = arith.constant dense<0.000000e+00> : vector<2x96xf32>
      %152 = tpu.matmul %141, %5, %cst_55 {dimension_numbers = #tpu.dot_dimension_numbers<[1], [0], [0], [1], [0, 0, 1, 1], [], []>} : vector<2x32xf32>, vector<32x96xf32>, vector<2x96xf32> -> vector<2x96xf32>
      %153 = vector.extract_strided_slice %151 {offsets = [0, 0], sizes = [2, 32], strides = [1, 1]} : vector<2x96xf32> to vector<2x32xf32>
      %154 = vector.extract_strided_slice %152 {offsets = [0, 0], sizes = [2, 32], strides = [1, 1]} : vector<2x96xf32> to vector<2x32xf32>
      %155 = arith.addf %153, %154 : vector<2x32xf32>
      %156 = arith.negf %155 : vector<2x32xf32>
      %157 = math.exp %156 : vector<2x32xf32>
      %cst_56 = arith.constant 1.000000e+00 : f32
      %158 = vector.broadcast %cst_56 : f32 to vector<2x32xf32>
      %159 = arith.addf %158, %157 : vector<2x32xf32>
      %160 = arith.divf %158, %159 : vector<2x32xf32>
      %161 = vector.extract_strided_slice %151 {offsets = [0, 32], sizes = [2, 32], strides = [1, 1]} : vector<2x96xf32> to vector<2x32xf32>
      %162 = vector.extract_strided_slice %152 {offsets = [0, 32], sizes = [2, 32], strides = [1, 1]} : vector<2x96xf32> to vector<2x32xf32>
      %163 = arith.addf %161, %162 : vector<2x32xf32>
      %164 = arith.negf %163 : vector<2x32xf32>
      %165 = math.exp %164 : vector<2x32xf32>
      %cst_57 = arith.constant 1.000000e+00 : f32
      %166 = vector.broadcast %cst_57 : f32 to vector<2x32xf32>
      %167 = arith.addf %166, %165 : vector<2x32xf32>
      %168 = arith.divf %166, %167 : vector<2x32xf32>
      %169 = vector.extract_strided_slice %151 {offsets = [0, 64], sizes = [2, 32], strides = [1, 1]} : vector<2x96xf32> to vector<2x32xf32>
      %170 = vector.extract_strided_slice %152 {offsets = [0, 64], sizes = [2, 32], strides = [1, 1]} : vector<2x96xf32> to vector<2x32xf32>
      %171 = vector.broadcast %7 : vector<1x32xf32> to vector<2x32xf32>
      %172 = arith.addf %170, %171 : vector<2x32xf32>
      %173 = arith.mulf %160, %172 : vector<2x32xf32>
      %174 = arith.addf %169, %173 : vector<2x32xf32>
      %175 = math.tanh %174 : vector<2x32xf32>
      %cst_58 = arith.constant 1.000000e+00 : f32
      %176 = vector.broadcast %cst_58 : f32 to vector<2x32xf32>
      %177 = arith.subf %176, %168 : vector<2x32xf32>
      %178 = arith.mulf %177, %175 : vector<2x32xf32>
      %179 = arith.mulf %168, %141 : vector<2x32xf32>
      %180 = arith.addf %178, %179 : vector<2x32xf32>
      %181 = vector.broadcast %149 : i32 to vector<2x1xi32>
      %182 = arith.cmpi slt, %181, %3 : vector<2x1xi32>
      %183 = vector.shape_cast %182 : vector<2x1xi1> to vector<2x1xi1>
      %184 = vector.broadcast %183 : vector<2x1xi1> to vector<2x32xi1>
      %185 = arith.select %184, %180, %141 : vector<2x32xi1>, vector<2x32xf32>
      %cst_59 = arith.constant 0.000000e+00 : f32
      %186 = vector.shape_cast %182 : vector<2x1xi1> to vector<2x1xi1>
      %187 = vector.broadcast %186 : vector<2x1xi1> to vector<2x32xi1>
      %188 = vector.broadcast %cst_59 : f32 to vector<2x32xf32>
      %189 = arith.select %187, %180, %188 : vector<2x32xi1>, vector<2x32xf32>
      %c0_60 = arith.constant 0 : index
      %c0_61 = arith.constant 0 : index
      %c0_62 = arith.constant 0 : index
      %c0_63 = arith.constant 0 : index
      %190 = vector.load %arg6[%c0_60, %c0_61, %c0_62, %c0_63] : memref<1x4x2x32xf32, #tpu.memory_space<vmem>>, vector<1x1x2x32xf32>
      %191 = vector.shape_cast %190 : vector<1x1x2x32xf32> to vector<2x32xf32>
      %192 = vector.shape_cast %189 : vector<2x32xf32> to vector<1x1x2x32xf32>
      tpu.vector_store %arg6[%c0_60, %c0_61, %c0_62, %c0_63], %192 {strides = array<i32>} : memref<1x4x2x32xf32, #tpu.memory_space<vmem>>, vector<1x1x2x32xf32>,
      %c0_64 = arith.constant 0 : index
      %c0_65 = arith.constant 0 : index
      %193 = vector.load %arg8[%c0_64, %c0_65] : memref<2x32xf32, #tpu.memory_space<vmem>>, vector<2x32xf32>
      tpu.vector_store %arg8[%c0_64, %c0_65], %185 {strides = array<i32>} : memref<2x32xf32, #tpu.memory_space<vmem>>, vector<2x32xf32>,
      %c1_i32_66 = arith.constant 1 : i32
      %194 = arith.cmpi eq, %arg1, %c1_i32_66 : i32
      %195 = arith.extui %194 : i1 to i32
      %c0_i32_67 = arith.constant 0 : i32
      %196 = arith.cmpi ne, %195, %c0_i32_67 : i32
      scf.if %196 {
        %c0_68 = arith.constant 0 : index
        %c0_69 = arith.constant 0 : index
        %c0_70 = arith.constant 0 : index
        %197 = vector.load %arg7[%c0_68, %c0_69, %c0_70] : memref<1x2x32xf32, #tpu.memory_space<vmem>>, vector<1x2x32xf32>
        %198 = vector.shape_cast %197 : vector<1x2x32xf32> to vector<2x32xf32>
        %199 = vector.shape_cast %185 : vector<2x32xf32> to vector<1x2x32xf32>
        tpu.vector_store %arg7[%c0_68, %c0_69, %c0_70], %199 {strides = array<i32>} : memref<1x2x32xf32, #tpu.memory_space<vmem>>, vector<1x2x32xf32>,
      } else {
      }
    } else {
    }
    return
  }
  func.func @transform_0(%arg0: i32, %arg1: i32) -> (i32, i32) {
    %c0_i32 = arith.constant 0 : i32
    %c0_i32_0 = arith.constant 0 : i32
    %c0_i32_1 = arith.constant 0 : i32
    return %c0_i32, %c0_i32_0 : i32, i32
  }
  func.func @transform_1(%arg0: i32, %arg1: i32) -> (i32, i32, i32, i32) {
    %c2_i32 = arith.constant 2 : i32
    %0 = arith.muli %c2_i32, %arg1 : i32
    %c1_i32 = arith.constant 1 : i32
    %1 = arith.subi %c1_i32, %0 : i32
    %2 = arith.muli %arg0, %1 : i32
    %3 = arith.addi %arg1, %2 : i32
    %c0_i32 = arith.constant 0 : i32
    %c0_i32_0 = arith.constant 0 : i32
    %c0_i32_1 = arith.constant 0 : i32
    return %arg0, %3, %c0_i32, %c0_i32_0 : i32, i32, i32, i32
  }
  func.func @transform_2(%arg0: i32, %arg1: i32) -> (i32, i32, i32) {
    %c0_i32 = arith.constant 0 : i32
    %c0_i32_0 = arith.constant 0 : i32
    %c0_i32_1 = arith.constant 0 : i32
    return %arg0, %c0_i32, %c0_i32_0 : i32, i32, i32
  }
  func.func @transform_3(%arg0: i32, %arg1: i32) -> (i32, i32, i32) {
    %c0_i32 = arith.constant 0 : i32
    %c0_i32_0 = arith.constant 0 : i32
    %c0_i32_1 = arith.constant 0 : i32
    return %arg0, %c0_i32, %c0_i32_0 : i32, i32, i32
  }
  func.func @transform_4(%arg0: i32, %arg1: i32) -> (i32, i32, i32, i32) {
    %c2_i32 = arith.constant 2 : i32
    %0 = arith.muli %c2_i32, %arg1 : i32
    %c1_i32 = arith.constant 1 : i32
    %1 = arith.subi %c1_i32, %0 : i32
    %2 = arith.muli %arg0, %1 : i32
    %3 = arith.addi %arg1, %2 : i32
    %c0_i32 = arith.constant 0 : i32
    %c0_i32_0 = arith.constant 0 : i32
    %c0_i32_1 = arith.constant 0 : i32
    return %arg0, %3, %c0_i32, %c0_i32_0 : i32, i32, i32, i32
  }
  func.func @transform_5(%arg0: i32, %arg1: i32) -> (i32, i32, i32) {
    %c0_i32 = arith.constant 0 : i32
    %c0_i32_0 = arith.constant 0 : i32
    %c0_i32_1 = arith.constant 0 : i32
    return %arg0, %c0_i32, %c0_i32_0 : i32, i32, i32
  }
}

</mosaic_0001>

<llo_original>
// kernel: encoder_forward.1
$region0: #{encoder_forward.1}
  #allocation0 [shape = 'u32[]', space=smem, size = 0x4, offset = 0x4, fixed_abs, tag = 'smem constant byte address 0x4 - core index']
  #allocation1 [shape = 'u32[144,128]{1,0:T(1,128)}', space=vmem, size = 0x12000, scoped, tag = 'internal scratch']
  #allocation2 [shape = 'f32[2,32]{1,0:T(2,128)}', space=vmem, size = 0x400, scoped, tag = 'scratch operand']
  %s0 = inlined_call_operand.vmem [shape: s32[2,1], index: 0, kind: input, shape index: {}]
  %s1 = inlined_call_operand.vmem [shape: f32[2,8,2,96], index: 1, kind: input, shape index: {}]
  %s2 = inlined_call_operand.vmem [shape: f32[2,32,96], index: 2, kind: input, shape index: {}]
  %s3 = inlined_call_operand.vmem [shape: f32[2,1,32], index: 3, kind: input, shape index: {}]
  %s4 = inlined_call_operand.vmem [shape: f32[2,8,2,32], index: 4, kind: output, shape index: {0}]
  %s5 = inlined_call_operand.vmem [shape: f32[2,2,32], index: 5, kind: output, shape index: {1}]
  %6 = xla_tuple %s4, %s5
  %s7 = sld [smem:[#allocation0]]
  $region77: #{encoder_forward.1} parent=0
    _
  %s9 = ssub.s32 1, %s7
  %s10 = scalar_select 0, %s9, %s7
  loop: start=0, step=1, limit=6
  $region2: #{encoder_forward.1} parent=0 // loop_pre_header
    _
  $region3: #{encoder_forward.1} parent=0 // loop_header
    %s12 = sphi 0, %s16
    %p13 = scmp.ge.s32.totalorder %s12, 6
    %s19 = sphi 0, %s31
    %s20 = sphi 0, %s27
    %s21 = sphi 0, %s19
    %s22 = sphi 0, %s20
    %s23 = sphi 0, %s21
    %s24 = sphi 0, %s22
    %s32 = sphi 0, %s32
    %s34 = sphi 0, %s32
    %s35 = sphi 0, %s34
    %s49 = sphi 0, %s35
    %s65 = sphi 0, %s67
    %s68 = sphi 0, %s65
    %s69 = sphi 0, %s68
    %s85 = sphi 0, %s69
    %s91 = sphi 0, %s93
    %s94 = sphi 0, %s91
    %s95 = sphi 0, %s94
    %s111 = sphi 0, %s95
    %s117 = sphi 0, %s119
    %s120 = sphi 0, %s117
    %s121 = sphi 0, %s120
    %s137 = sphi 0, %s121
    %s153 = sphi 0, %s155
    %s156 = sphi 0, %s153
    %s157 = sphi 0, %s156
    %s173 = sphi 0, %s157
    %s179 = sphi 0, %s181
    %s182 = sphi 0, %s179
    %s183 = sphi 0, %s182
    %s199 = sphi 0, %s183
  $region4: #{encoder_forward.1} parent=0 // loop_header_branch
    %15 = sbr.rel (%p13) target = $region8
  $region5: #{encoder_forward.1} parent=0 // loop_body
    %s17 = ssub.s32 %s12, 1
    %s18 = ssub.s32 %s12, 2
    %s25 = sadd.s32 1, %s20
    %p26 = scmp.ge.s32.totalorder %s25, 2
    %s27 = scalar_select %p26, 0, %s25
    %s28 = sadd.s32 1, %s19
    %s29 = scalar_select %p26, %s28, %s19
    %p30 = scmp.ge.s32.totalorder %s29, 2
    %s31 = scalar_select %p30, 0, %s29
    %s33 = sadd.s32 %s32, 1
    %p36 = scmp.eq.s32.totalorder %s12, 3
    %p37 = scmp.ne.s32.totalorder %s32, %s34
    %p38 = scmp.eq.s32.totalorder %s12, 0
    %p39 = por %p37, %p38
    %p40 = scmp.ne.s32.totalorder %s32, %s34
    %p41 = scmp.eq.s32.totalorder %s17, 3
    %p42 = por %p40, %p41
    %p43 = scmp.ne.s32.totalorder %s34, %s35
    %p44 = scmp.eq.s32.totalorder %s17, 0
    %p45 = por %p43, %p44
    %p46 = scmp.ne.s32.totalorder %s34, %s35
    %p47 = scmp.eq.s32.totalorder %s18, 3
    %p48 = por %p46, %p47
    %p50 = scmp.ne.s32.totalorder %s35, %s49
    %p51 = scmp.eq.s32.totalorder %s18, 0
    %p52 = por %p50, %p51
    %s53 = smul.u32 %s20, 2
    %s54 = ssub.s32 1, %s53
    %s55 = smul.u32 %s19, %s54
    %s56 = sadd.s32 %s20, %s55
    %s57 = smul.u32 %s27, 2
    %s58 = ssub.s32 1, %s57
    %s59 = smul.u32 %s31, %s58
    %s60 = sadd.s32 %s27, %s59
    %s61 = ssub.s32 %s19, %s31
    %s62 = ssub.s32 %s56, %s60
    %s63 = sor.u32 %s61, %s62
    %p64 = scmp.eq.s32.totalorder %s63, 0
    %s66 = sadd.s32 %s65, 1
    %s67 = scalar_select %p64, %s65, %s66
    %p70 = pneg %p64
    %p71 = scmp.eq.s32.totalorder %s12, 3
    %p72 = por %p70, %p71
    %p73 = scmp.ne.s32.totalorder %s65, %s68
    %p74 = scmp.eq.s32.totalorder %s12, 0
    %p75 = por %p73, %p74
    %p76 = scmp.ne.s32.totalorder %s65, %s68
    %p77 = scmp.eq.s32.totalorder %s17, 3
    %p78 = por %p76, %p77
    %p79 = scmp.ne.s32.totalorder %s68, %s69
    %p80 = scmp.eq.s32.totalorder %s17, 0
    %p81 = por %p79, %p80
    %p82 = scmp.ne.s32.totalorder %s68, %s69
    %p83 = scmp.eq.s32.totalorder %s18, 3
    %p84 = por %p82, %p83
    %p86 = scmp.ne.s32.totalorder %s69, %s85
    %p87 = scmp.eq.s32.totalorder %s18, 0
    %p88 = por %p86, %p87
    %s89 = ssub.s32 %s19, %s31
    %p90 = scmp.eq.s32.totalorder %s89, 0
    %s92 = sadd.s32 %s91, 1
    %s93 = scalar_select %p90, %s91, %s92
    %p96 = pneg %p90
    %p97 = scmp.eq.s32.totalorder %s12, 3
    %p98 = por %p96, %p97
    %p99 = scmp.ne.s32.totalorder %s91, %s94
    %p100 = scmp.eq.s32.totalorder %s12, 0
    %p101 = por %p99, %p100
    %p102 = scmp.ne.s32.totalorder %s91, %s94
    %p103 = scmp.eq.s32.totalorder %s17, 3
    %p104 = por %p102, %p103
    %p105 = scmp.ne.s32.totalorder %s94, %s95
    %p106 = scmp.eq.s32.totalorder %s17, 0
    %p107 = por %p105, %p106
    %p108 = scmp.ne.s32.totalorder %s94, %s95
    %p109 = scmp.eq.s32.totalorder %s18, 3
    %p110 = por %p108, %p109
    %p112 = scmp.ne.s32.totalorder %s95, %s111
    %p113 = scmp.eq.s32.totalorder %s18, 0
    %p114 = por %p112, %p113
    %s115 = ssub.s32 %s19, %s31
    %p116 = scmp.eq.s32.totalorder %s115, 0
    %s118 = sadd.s32 %s117, 1
    %s119 = scalar_select %p116, %s117, %s118
    %p122 = pneg %p116
    %p123 = scmp.eq.s32.totalorder %s12, 3
    %p124 = por %p122, %p123
    %p125 = scmp.ne.s32.totalorder %s117, %s120
    %p126 = scmp.eq.s32.totalorder %s12, 0
    %p127 = por %p125, %p126
    %p128 = scmp.ne.s32.totalorder %s117, %s120
    %p129 = scmp.eq.s32.totalorder %s17, 3
    %p130 = por %p128, %p129
    %p131 = scmp.ne.s32.totalorder %s120, %s121
    %p132 = scmp.eq.s32.totalorder %s17, 0
    %p133 = por %p131, %p132
    %p134 = scmp.ne.s32.totalorder %s120, %s121
    %p135 = scmp.eq.s32.totalorder %s18, 3
    %p136 = por %p134, %p135
    %p138 = scmp.ne.s32.totalorder %s121, %s137
    %p139 = scmp.eq.s32.totalorder %s18, 0
    %p140 = por %p138, %p139
    %s141 = smul.u32 %s20, 2
    %s142 = ssub.s32 1, %s141
    %s143 = smul.u32 %s19, %s142
    %s144 = sadd.s32 %s20, %s143
    %s145 = smul.u32 %s27, 2
    %s146 = ssub.s32 1, %s145
    %s147 = smul.u32 %s31, %s146
    %s148 = sadd.s32 %s27, %s147
    %s149 = ssub.s32 %s19, %s31
    %s150 = ssub.s32 %s144, %s148
    %s151 = sor.u32 %s149, %s150
    %p152 = scmp.eq.s32.totalorder %s151, 0
    %s154 = sadd.s32 %s153, 1
    %s155 = scalar_select %p152, %s153, %s154
    %p158 = pneg %p152
    %p159 = scmp.eq.s32.totalorder %s12, 3
    %p160 = por %p158, %p159
    %p161 = scmp.ne.s32.totalorder %s153, %s156
    %p162 = scmp.eq.s32.totalorder %s12, 0
    %p163 = por %p161, %p162
    %p164 = scmp.ne.s32.totalorder %s153, %s156
    %p165 = scmp.eq.s32.totalorder %s17, 3
    %p166 = por %p164, %p165
    %p167 = scmp.ne.s32.totalorder %s156, %s157
    %p168 = scmp.eq.s32.totalorder %s17, 0
    %p169 = por %p167, %p168
    %p170 = scmp.ne.s32.totalorder %s156, %s157
    %p171 = scmp.eq.s32.totalorder %s18, 3
    %p172 = por %p170, %p171
    %p174 = scmp.ne.s32.totalorder %s157, %s173
    %p175 = scmp.eq.s32.totalorder %s18, 0
    %p176 = por %p174, %p175
    %s177 = ssub.s32 %s19, %s31
    %p178 = scmp.eq.s32.totalorder %s177, 0
    %s180 = sadd.s32 %s179, 1
    %s181 = scalar_select %p178, %s179, %s180
    %p184 = pneg %p178
    %p185 = scmp.eq.s32.totalorder %s12, 3
    %p186 = por %p184, %p185
    %p187 = scmp.ne.s32.totalorder %s179, %s182
    %p188 = scmp.eq.s32.totalorder %s12, 0
    %p189 = por %p187, %p188
    %p190 = scmp.ne.s32.totalorder %s179, %s182
    %p191 = scmp.eq.s32.totalorder %s17, 3
    %p192 = por %p190, %p191
    %p193 = scmp.ne.s32.totalorder %s182, %s183
    %p194 = scmp.eq.s32.totalorder %s17, 0
    %p195 = por %p193, %p194
    %p196 = scmp.ne.s32.totalorder %s182, %s183
    %p197 = scmp.eq.s32.totalorder %s18, 3
    %p198 = por %p196, %p197
    %p200 = scmp.ne.s32.totalorder %s183, %s199
    %p201 = scmp.eq.s32.totalorder %s18, 0
    %p202 = por %p200, %p201
    %p203 = scmp.le.s32.totalorder 1, %s12
    %p204 = scmp.lt.s32.totalorder %s12, 5
    %p205 = pnand %p203, %p204
    %p206 = pneg %p205
    // Predicated region
    $region9: #{encoder_forward.1} parent=5 // pred_check
      _
    $region10: #{encoder_forward.1} parent=5 // pred_check_branch
      %208 = sbr.rel (%p205) target = $region12
    $region11: #{encoder_forward.1} parent=5 // pred_region
      %s209 = ssub.s32 %s12, 1
      // Predicated region
      $region13: #{encoder_forward.1} parent=11 // pred_check
        %p210 = pneg %p45
      $region14: #{encoder_forward.1} parent=11 // pred_check_branch
        %212 = sbr.rel (%p210) target = $region16
      $region15: #{encoder_forward.1} parent=11 // pred_region
        _
      $region16: #{encoder_forward.1} parent=11 // pred_fallthru
        _
    $region12: #{encoder_forward.1} parent=5 // pred_fallthru
      _
    %p213 = scmp.lt.s32.totalorder %s12, 4
    // Predicated region
    $region17: #{encoder_forward.1} parent=5 // pred_check
      %p214 = pneg %p213
    $region18: #{encoder_forward.1} parent=5 // pred_check_branch
      %216 = sbr.rel (%p214) target = $region20
    $region19: #{encoder_forward.1} parent=5 // pred_region
      // Predicated region
      $region21: #{encoder_forward.1} parent=19 // pred_check
        %p217 = pneg %p75
      $region22: #{encoder_forward.1} parent=19 // pred_check_branch
        %219 = sbr.rel (%p217) target = $region24
      $region23: #{encoder_forward.1} parent=19 // pred_region
        %s220 = smul.u32 %s20, 2
        %s221 = ssub.s32 1, %s220
        %s222 = smul.u32 %s19, %s221
        %s223 = sadd.s32 %s20, %s222
        %s224 = smul.u32 4, %s223
        %p225 = scmp.lt.s32.totalorder %s19, 1
        %s226 = scalar_select %p225, %s19, 1
        %p227 = scmp.lt.s32.totalorder %s224, 7
        %s228 = scalar_select %p227, %s224, 7
        %s229 = smul.addr %s226, 8
        %s230 = sadd.s32 %s228, %s229
        %s231 = smul.addr %s230, 2
        %s232 = scalar_lea.vmem %s1, %s231
        %s233 = smul.u32 %s20, 2
        %s234 = ssub.s32 1, %s233
        %s235 = smul.u32 %s19, %s234
        %s236 = sadd.s32 %s20, %s235
        %s237 = smul.u32 4, %s236
      $region24: #{encoder_forward.1} parent=19 // pred_fallthru
        _
      // Predicated region
      $region25: #{encoder_forward.1} parent=19 // pred_check
        %p238 = pneg %p101
      $region26: #{encoder_forward.1} parent=19 // pred_check_branch
        %240 = sbr.rel (%p238) target = $region28
      $region27: #{encoder_forward.1} parent=19 // pred_region
        %p241 = scmp.lt.s32.totalorder %s19, 1
        %s242 = scalar_select %p241, %s19, 1
        %s243 = smul.addr %s242, 4
        %s244 = smul.addr %s243, 8
        %s245 = scalar_lea.vmem %s2, %s244
      $region28: #{encoder_forward.1} parent=19 // pred_fallthru
        _
      // Predicated region
      $region29: #{encoder_forward.1} parent=19 // pred_check
        %p246 = pneg %p127
      $region30: #{encoder_forward.1} parent=19 // pred_check_branch
        %248 = sbr.rel (%p246) target = $region32
      $region31: #{encoder_forward.1} parent=19 // pred_region
        %p249 = scmp.lt.s32.totalorder %s19, 1
        %s250 = scalar_select %p249, %s19, 1
        %s251 = scalar_lea.vmem %s3, %s250
      $region32: #{encoder_forward.1} parent=19 // pred_fallthru
        _
    $region20: #{encoder_forward.1} parent=5 // pred_fallthru
      _
    %p252 = scmp.le.s32.totalorder 1, %s12
    %p253 = scmp.lt.s32.totalorder %s12, 5
    %p254 = pnand %p252, %p253
    %p255 = pneg %p254
    // Predicated region
    $region33: #{encoder_forward.1} parent=5 // pred_check
      _
    $region34: #{encoder_forward.1} parent=5 // pred_check_branch
      %257 = sbr.rel (%p254) target = $region36
    $region35: #{encoder_forward.1} parent=5 // pred_region
      %s258 = ssub.s32 %s12, 1
      %p259 = pneg %p45
      %p260 = pneg %p42
      %s261 = smul.u32 %s22, 2
      %s262 = ssub.s32 1, %s261
      %s263 = smul.u32 %s21, %s262
      %s264 = sadd.s32 %s22, %s263
      %s265 = smul.u32 4, %s264
      %p266 = scmp.lt.s32.totalorder %s21, 1
      %s267 = scalar_select %p266, %s21, 1
      %p268 = scmp.lt.s32.totalorder %s265, 7
      %s269 = scalar_select %p268, %s265, 7
      %s270 = smul.addr %s267, 8
      %s271 = sadd.s32 %s269, %s270
      %s272 = smul.addr %s271, 2
      %s273 = scalar_lea.vmem %s1, %s272
      %p274 = pneg %p81
      %p275 = pneg %p78
      %p276 = scmp.lt.s32.totalorder %s21, 1
      %s277 = scalar_select %p276, %s21, 1
      %s278 = smul.addr %s277, 4
      %s279 = smul.addr %s278, 8
      %s280 = scalar_lea.vmem %s2, %s279
      %p281 = pneg %p107
      %p282 = pneg %p104
      %p283 = scmp.lt.s32.totalorder %s21, 1
      %s284 = scalar_select %p283, %s21, 1
      %s285 = scalar_lea.vmem %s3, %s284
      %p286 = pneg %p133
      %p287 = pneg %p130
      %p288 = pneg %p169
      %p289 = pneg %p166
      %s290 = smul.u32 %s22, 2
      %s291 = ssub.s32 1, %s290
      %s292 = smul.u32 %s21, %s291
      %s293 = sadd.s32 %s22, %s292
      %s294 = smul.u32 4, %s293
      %p295 = scmp.lt.s32.totalorder %s21, 1
      %s296 = scalar_select %p295, %s21, 1
      %p297 = scmp.lt.s32.totalorder %s294, 7
      %s298 = scalar_select %p297, %s294, 7
      %s299 = smul.addr %s296, 8
      %s300 = sadd.s32 %s298, %s299
      %s301 = smul.addr %s300, 2
      %s302 = scalar_lea.vmem %s4, %s301
      %p303 = pneg %p195
      %p304 = pneg %p192
      %p305 = scmp.lt.s32.totalorder %s21, 1
      %s306 = scalar_select %p305, %s21, 1
      %s307 = smul.addr %s306, 2
      %s308 = scalar_lea.vmem %s5, %s307
      %s309 = smul.u32 %s22, 2
      %s310 = ssub.s32 1, %s309
      %s311 = smul.u32 %s21, %s310
      %s312 = sadd.s32 %s22, %s311
      %s313 = smul.u32 4, %s312
      %p314 = scmp.lt.s32.totalorder %s21, 1
      %s315 = scalar_select %p314, %s21, 1
      %p316 = scmp.lt.s32.totalorder %s313, 7
      %s317 = scalar_select %p316, %s313, 7
      %s318 = smul.addr %s315, 8
      %s319 = sadd.s32 %s317, %s318
      %s320 = smul.addr %s319, 2
      %s321 = scalar_lea.vmem %s1, %s320
      %s322 = smul.u32 %s22, 2
      %s323 = ssub.s32 1, %s322
      %s324 = smul.u32 %s21, %s323
      %s325 = sadd.s32 %s22, %s324
      %s326 = smul.u32 4, %s325
      %p327 = scmp.lt.s32.totalorder %s21, 1
      %s328 = scalar_select %p327, %s21, 1
      %s329 = smul.addr %s328, 4
      %s330 = smul.addr %s329, 8
      %s331 = scalar_lea.vmem %s2, %s330
      %p332 = scmp.lt.s32.totalorder %s21, 1
      %s333 = scalar_select %p332, %s21, 1
      %s334 = scalar_lea.vmem %s3, %s333
      %s335 = smul.u32 %s22, 2
      %s336 = ssub.s32 1, %s335
      %s337 = smul.u32 %s21, %s336
      %s338 = sadd.s32 %s22, %s337
      %s339 = smul.u32 4, %s338
      %p340 = scmp.lt.s32.totalorder %s21, 1
      %s341 = scalar_select %p340, %s21, 1
      %p342 = scmp.lt.s32.totalorder %s339, 7
      %s343 = scalar_select %p342, %s339, 7
      %s344 = smul.addr %s341, 8
      %s345 = sadd.s32 %s343, %s344
      %s346 = smul.addr %s345, 2
      %s347 = scalar_lea.vmem %s4, %s346
      %s348 = smul.u32 %s22, 2
      %s349 = ssub.s32 1, %s348
      %s350 = smul.u32 %s21, %s349
      %s351 = sadd.s32 %s22, %s350
      %s352 = smul.u32 4, %s351
      %p353 = scmp.lt.s32.totalorder %s21, 1
      %s354 = scalar_select %p353, %s21, 1
      %s355 = smul.addr %s354, 2
      %s356 = scalar_lea.vmem %s5, %s355
      %p357 = scmp.eq.s32.totalorder %s22, 0
      // Predicated region
      $region37: #{encoder_forward.1} parent=35 // pred_check
        %p358 = pneg %p357
      $region38: #{encoder_forward.1} parent=35 // pred_check_branch
        %360 = sbr.rel (%p358) target = $region40
      $region39: #{encoder_forward.1} parent=35 // pred_region
        %vm361 = vcmask 254976
        %362 = vst.msk [vmem:[#allocation2] sm:$0x3] %vm361, 0.0
      $region40: #{encoder_forward.1} parent=35 // pred_fallthru
        _
      %v363 = vld [vmem:[%s0] sm:$0x3]
      %v364 = vld [vmem:[%s331] sm:$0xff]
      %v365 = vld [vmem:[%s331 + $0x8] sm:$0xff]
      %v366 = vld [vmem:[%s331 + $0x10] sm:$0xff]
      %v367 = vld [vmem:[%s331 + $0x18] sm:$0xff]
      %v368 = vld [vmem:[%s334] sm:$0x1]
      %p369 = scmp.eq.s32.totalorder %s21, 0
      // Predicated region
      $region41: #{encoder_forward.1} parent=35 // pred_check
        %p370 = pneg %p369
      $region42: #{encoder_forward.1} parent=35 // pred_check_branch
        %372 = sbr.rel (%p370) target = $region44
      $region43: #{encoder_forward.1} parent=35 // pred_region
        %s373 = smul.u32 %s22, 4
        %v374 = vld [vmem:[#allocation2] sm:$0x3]
        %v375 = vld [vmem:[%s321] sm:$0x3]
        %vm376 = vcmask 261120
        %v378 = vsel %vm376, %v374, 0
        %380 = vmatprep.subr.mxu0 0.0
        %381 = vmatpush1.msra.mxu0 %v364
        %382 = vmatprep.subr.mxu0 0.0
        %383 = vmatpush1.msra.mxu0 %v365
        %384 = vmatprep.subr.mxu0 0.0
        %385 = vmatpush1.msra.mxu0 %v366
        %386 = vmatprep.subr.mxu0 0.0
        %387 = vmatpush1.msra.mxu0 %v367
        %388 = vmatprep.subr.mxu0 0.0
        %389 = vmatpush1.msra.mxu0 0.0
        %390 = vmatprep.subr.mxu0 0.0
        %391 = vmatpush1.msra.mxu0 0.0
        %392 = vmatprep.subr.mxu0 0.0
        %393 = vmatpush1.msra.mxu0 0.0
        %394 = vmatprep.subr.mxu0 0.0
        %395 = vmatpush1.msra.mxu0 0.0
        %396 = vmatprep.subr.mxu0 0.0
        %397 = vmatpush1.msra.mxu0 0.0
        %398 = vmatprep.subr.mxu0 0.0
        %399 = vmatpush1.msra.mxu0 0.0
        %400 = vmatprep.subr.mxu0 0.0
        %401 = vmatpush1.msra.mxu0 0.0
        %402 = vmatprep.subr.mxu0 0.0
        %403 = vmatpush1.msra.mxu0 0.0
        %404 = vmatprep.subr.mxu0 0.0
        %405 = vmatpush1.msra.mxu0 0.0
        %406 = vmatprep.subr.mxu0 0.0
        %407 = vmatpush1.msra.mxu0 0.0
        %408 = vmatprep.subr.mxu0 0.0
        %409 = vmatpush1.msra.mxu0 0.0
        %410 = vmatprep.subr.mxu0 0.0
        %411 = vmatpush1.msra.mxu0 0.0
        %412 = vmatprep.subr.mxu0 0.0
        %413 = vmatpush1.msra.mxu0 0.0
        %414 = vmatprep.subr.mxu0 0.0
        %415 = vmatpush1.msra.mxu0 0.0
        %416 = vmatprep.subr.mxu0 0.0
        %417 = vmatpush1.msra.mxu0 0.0
        %418 = vmatprep.subr.mxu0 0.0
        %419 = vmatpush1.msra.mxu0 0.0
        %420 = vmatprep.subr.mxu0 0.0
        %421 = vmatpush1.msra.mxu0 0.0
        %422 = vmatprep.subr.mxu0 0.0
        %423 = vmatpush1.msra.mxu0 0.0
        %424 = vmatprep.subr.mxu0 0.0
        %425 = vmatpush1.msra.mxu0 0.0
        %426 = vmatprep.subr.mxu0 0.0
        %427 = vmatpush1.msra.mxu0 0.0
        %428 = vmatprep.subr.mxu0 0.0
        %429 = vmatpush1.msra.mxu0 0.0
        %430 = vmatprep.subr.mxu0 0.0
        %431 = vmatpush1.msra.mxu0 0.0
        %432 = vmatprep.subr.mxu0 0.0
        %433 = vmatpush1.msra.mxu0 0.0
        %434 = vmatprep.subr.mxu0 0.0
        %435 = vmatpush1.msra.mxu0 0.0
        %436 = vmatprep.subr.mxu0 0.0
        %437 = vmatpush1.msra.mxu0 0.0
        %438 = vmatprep.subr.mxu0 0.0
        %439 = vmatpush1.msra.mxu0 0.0
        %440 = vmatprep.subr.mxu0 0.0
        %441 = vmatpush1.msra.mxu0 0.0
        %442 = vmatprep.subr.mxu0 0.0
        %443 = vmatpush1.msra.mxu0 0.0
        %444 = vmatprep.mubr.f32.mxu0 0.0
        %445 = vmatmul.mubr.f32.gmra.mrb[0].mxu0 %v378
        %v446 = vpop.f32.mrb[0].mxu0
        %v447 = vadd.f32 0.0, %v446
        %v448 = vpop.f32.mrb[0].mxu0
        %449 = vdwg.mxu0
        %v450 = vadd.f32 %v375, %v447
        %v451 = vxor.u32 %v450, 2147483648
        %v452 = vmul.f32 %v451, 1.442695
        %v453 = vpow.pop %v452
        %v454 = vadd.f32 %v453, 1.0
        %v455 = vrcp.pop %v454
        %v456 = vmul.f32 1.0, %v455
        %v458 = vlaneseq
        %v459 = vshrl.u32 %v458, 7
        %v460 = vsub.s32 0, %v459
        %v461 = vrot.slane %v368, %v460
        %462 = vrot.lane.b32.xlu0 %v461, 64
        %v463 = vpop.permute.xlu0 %462
        %v465 = vadd.f32 %v447, %v463
        %467 = vrot.lane.b32.xlu0 %v465, 64
        %v468 = vpop.permute.xlu0 %467
        %v470 = vmul.f32 %v456, %v468
        %472 = vrot.lane.b32.xlu0 %v470, 64
        %v473 = vpop.permute.xlu0 %472
        %v475 = vadd.f32 %v375, %v473
        %v476 = vtanh.pop %v475
        %v477 = vsub.f32 1.0, %v456
        %479 = vrot.lane.b32.xlu0 %v476, 96
        %v480 = vpop.permute.xlu0 %479
        %v482 = vmul.f32 %v477, %v480
        %483 = vrot.lane.b32.xlu0 %v374, 32
        %v484 = vpop.permute.xlu0 %483
        %v486 = vmul.f32 %v456, %v484
        %v487 = vadd.f32 %v482, %v486
        %v488 = vstv %s373
        %vm489 = vcmp.lt.s32.totalorder %v488, %v363
        %v490 = vsel %vm489, 1, 0
        %491 = vset.pattern.permute.xlu0 0
        %492 = vperm.xlu0 %491, %v490
        %v493 = vpop.permute.xlu0 %492
        %vm494 = vcmp.eq.s32.totalorder %v493, 1
        %v495 = vsel %vm494, %v487, %v484
        %v496 = vsel %vm494, %v487, 0.0
        %498 = vrot.lane.b32.xlu0 %v496, 96
        %v499 = vpop.permute.xlu0 %498
        %vm501 = vcmask 254976
        %502 = vst.msk [vmem:[%s347] sm:$0x3] %vm501, %v499
        %s503 = sadd.s32 %s373, 1
        %s504 = scalar_lea.vmem %s321, 2
        %v505 = vld [vmem:[%s504] sm:$0x3]
        %507 = vrot.lane.b32.xlu0 %v495, 96
        %v508 = vpop.permute.xlu0 %507
        %v509 = vsel %vm376, %v508, 0
        %511 = vmatprep.subr.mxu0 0.0
        %512 = vmatpush1.msra.mxu0 %v364
        %513 = vmatprep.subr.mxu0 0.0
        %514 = vmatpush1.msra.mxu0 %v365
        %515 = vmatprep.subr.mxu0 0.0
        %516 = vmatpush1.msra.mxu0 %v366
        %517 = vmatprep.subr.mxu0 0.0
        %518 = vmatpush1.msra.mxu0 %v367
        %519 = vmatprep.subr.mxu0 0.0
        %520 = vmatpush1.msra.mxu0 0.0
        %521 = vmatprep.subr.mxu0 0.0
        %522 = vmatpush1.msra.mxu0 0.0
        %523 = vmatprep.subr.mxu0 0.0
        %524 = vmatpush1.msra.mxu0 0.0
        %525 = vmatprep.subr.mxu0 0.0
        %526 = vmatpush1.msra.mxu0 0.0
        %527 = vmatprep.subr.mxu0 0.0
        %528 = vmatpush1.msra.mxu0 0.0
        %529 = vmatprep.subr.mxu0 0.0
        %530 = vmatpush1.msra.mxu0 0.0
        %531 = vmatprep.subr.mxu0 0.0
        %532 = vmatpush1.msra.mxu0 0.0
        %533 = vmatprep.subr.mxu0 0.0
        %534 = vmatpush1.msra.mxu0 0.0
        %535 = vmatprep.subr.mxu0 0.0
        %536 = vmatpush1.msra.mxu0 0.0
        %537 = vmatprep.subr.mxu0 0.0
        %538 = vmatpush1.msra.mxu0 0.0
        %539 = vmatprep.subr.mxu0 0.0
        %540 = vmatpush1.msra.mxu0 0.0
        %541 = vmatprep.subr.mxu0 0.0
        %542 = vmatpush1.msra.mxu0 0.0
        %543 = vmatprep.subr.mxu0 0.0
        %544 = vmatpush1.msra.mxu0 0.0
        %545 = vmatprep.subr.mxu0 0.0
        %546 = vmatpush1.msra.mxu0 0.0
        %547 = vmatprep.subr.mxu0 0.0
        %548 = vmatpush1.msra.mxu0 0.0
        %549 = vmatprep.subr.mxu0 0.0
        %550 = vmatpush1.msra.mxu0 0.0
        %551 = vmatprep.subr.mxu0 0.0
        %552 = vmatpush1.msra.mxu0 0.0
        %553 = vmatprep.subr.mxu0 0.0
        %554 = vmatpush1.msra.mxu0 0.0
        %555 = vmatprep.subr.mxu0 0.0
        %556 = vmatpush1.msra.mxu0 0.0
        %557 = vmatprep.subr.mxu0 0.0
        %558 = vmatpush1.msra.mxu0 0.0
        %559 = vmatprep.subr.mxu0 0.0
        %560 = vmatpush1.msra.mxu0 0.0
        %561 = vmatprep.subr.mxu0 0.0
        %562 = vmatpush1.msra.mxu0 0.0
        %563 = vmatprep.subr.mxu0 0.0
        %564 = vmatpush1.msra.mxu0 0.0
        %565 = vmatprep.subr.mxu0 0.0
        %566 = vmatpush1.msra.mxu0 0.0
        %567 = vmatprep.subr.mxu0 0.0
        %568 = vmatpush1.msra.mxu0 0.0
        %569 = vmatprep.subr.mxu0 0.0
        %570 = vmatpush1.msra.mxu0 0.0
        %571 = vmatprep.subr.mxu0 0.0
        %572 = vmatpush1.msra.mxu0 0.0
        %573 = vmatprep.subr.mxu0 0.0
        %574 = vmatpush1.msra.mxu0 0.0
        %575 = vmatprep.mubr.f32.mxu0 0.0
        %576 = vmatmul.mubr.f32.gmra.mrb[0].mxu0 %v509
        %v577 = vpop.f32.mrb[0].mxu0
        %v578 = vadd.f32 0.0, %v577
        %v579 = vpop.f32.mrb[0].mxu0
        %580 = vdwg.mxu0
        %v581 = vadd.f32 %v505, %v578
        %v582 = vxor.u32 %v581, 2147483648
        %v583 = vmul.f32 %v582, 1.442695
        %v584 = vpow.pop %v583
        %v585 = vadd.f32 %v584, 1.0
        %v586 = vrcp.pop %v585
        %v587 = vmul.f32 1.0, %v586
        %v588 = vadd.f32 %v578, %v463
        %590 = vrot.lane.b32.xlu0 %v588, 64
        %v591 = vpop.permute.xlu0 %590
        %v593 = vmul.f32 %v587, %v591
        %595 = vrot.lane.b32.xlu0 %v593, 64
        %v596 = vpop.permute.xlu0 %595
        %v598 = vadd.f32 %v505, %v596
        %v599 = vtanh.pop %v598
        %v600 = vsub.f32 1.0, %v587
        %602 = vrot.lane.b32.xlu0 %v599, 96
        %v603 = vpop.permute.xlu0 %602
        %v605 = vmul.f32 %v600, %v603
        %v606 = vmul.f32 %v587, %v495
        %v607 = vadd.f32 %v605, %v606
        %v608 = vstv %s503
        %vm609 = vcmp.lt.s32.totalorder %v608, %v363
        %v610 = vsel %vm609, 1, 0
        %611 = vset.pattern.permute.xlu0 0
        %612 = vperm.xlu0 %611, %v610
        %v613 = vpop.permute.xlu0 %612
        %vm614 = vcmp.eq.s32.totalorder %v613, 1
        %v615 = vsel %vm614, %v607, %v495
        %v616 = vsel %vm614, %v607, 0.0
        %618 = vrot.lane.b32.xlu0 %v616, 96
        %v619 = vpop.permute.xlu0 %618
        %s621 = scalar_lea.vmem %s347, 2
        %622 = vst.msk [vmem:[%s621] sm:$0x3] %vm501, %v619
        %s623 = sadd.s32 %s373, 2
        %s624 = scalar_lea.vmem %s321, 4
        %v625 = vld [vmem:[%s624] sm:$0x3]
        %627 = vrot.lane.b32.xlu0 %v615, 96
        %v628 = vpop.permute.xlu0 %627
        %v629 = vsel %vm376, %v628, 0
        %631 = vmatprep.subr.mxu0 0.0
        %632 = vmatpush1.msra.mxu0 %v364
        %633 = vmatprep.subr.mxu0 0.0
        %634 = vmatpush1.msra.mxu0 %v365
        %635 = vmatprep.subr.mxu0 0.0
        %636 = vmatpush1.msra.mxu0 %v366
        %637 = vmatprep.subr.mxu0 0.0
        %638 = vmatpush1.msra.mxu0 %v367
        %639 = vmatprep.subr.mxu0 0.0
        %640 = vmatpush1.msra.mxu0 0.0
        %641 = vmatprep.subr.mxu0 0.0
        %642 = vmatpush1.msra.mxu0 0.0
        %643 = vmatprep.subr.mxu0 0.0
        %644 = vmatpush1.msra.mxu0 0.0
        %645 = vmatprep.subr.mxu0 0.0
        %646 = vmatpush1.msra.mxu0 0.0
        %647 = vmatprep.subr.mxu0 0.0
        %648 = vmatpush1.msra.mxu0 0.0
        %649 = vmatprep.subr.mxu0 0.0
        %650 = vmatpush1.msra.mxu0 0.0
        %651 = vmatprep.subr.mxu0 0.0
        %652 = vmatpush1.msra.mxu0 0.0
        %653 = vmatprep.subr.mxu0 0.0
        %654 = vmatpush1.msra.mxu0 0.0
        %655 = vmatprep.subr.mxu0 0.0
        %656 = vmatpush1.msra.mxu0 0.0
        %657 = vmatprep.subr.mxu0 0.0
        %658 = vmatpush1.msra.mxu0 0.0
        %659 = vmatprep.subr.mxu0 0.0
        %660 = vmatpush1.msra.mxu0 0.0
        %661 = vmatprep.subr.mxu0 0.0
        %662 = vmatpush1.msra.mxu0 0.0
        %663 = vmatprep.subr.mxu0 0.0
        %664 = vmatpush1.msra.mxu0 0.0
        %665 = vmatprep.subr.mxu0 0.0
        %666 = vmatpush1.msra.mxu0 0.0
        %667 = vmatprep.subr.mxu0 0.0
        %668 = vmatpush1.msra.mxu0 0.0
        %669 = vmatprep.subr.mxu0 0.0
        %670 = vmatpush1.msra.mxu0 0.0
        %671 = vmatprep.subr.mxu0 0.0
        %672 = vmatpush1.msra.mxu0 0.0
        %673 = vmatprep.subr.mxu0 0.0
        %674 = vmatpush1.msra.mxu0 0.0
        %675 = vmatprep.subr.mxu0 0.0
        %676 = vmatpush1.msra.mxu0 0.0
        %677 = vmatprep.subr.mxu0 0.0
        %678 = vmatpush1.msra.mxu0 0.0
        %679 = vmatprep.subr.mxu0 0.0
        %680 = vmatpush1.msra.mxu0 0.0
        %681 = vmatprep.subr.mxu0 0.0
        %682 = vmatpush1.msra.mxu0 0.0
        %683 = vmatprep.subr.mxu0 0.0
        %684 = vmatpush1.msra.mxu0 0.0
        %685 = vmatprep.subr.mxu0 0.0
        %686 = vmatpush1.msra.mxu0 0.0
        %687 = vmatprep.subr.mxu0 0.0
        %688 = vmatpush1.msra.mxu0 0.0
        %689 = vmatprep.subr.mxu0 0.0
        %690 = vmatpush1.msra.mxu0 0.0
        %691 = vmatprep.subr.mxu0 0.0
        %692 = vmatpush1.msra.mxu0 0.0
        %693 = vmatprep.subr.mxu0 0.0
        %694 = vmatpush1.msra.mxu0 0.0
        %695 = vmatprep.mubr.f32.mxu0 0.0
        %696 = vmatmul.mubr.f32.gmra.mrb[0].mxu0 %v629
        %v697 = vpop.f32.mrb[0].mxu0
        %v698 = vadd.f32 0.0, %v697
        %v699 = vpop.f32.mrb[0].mxu0
        %700 = vdwg.mxu0
        %v701 = vadd.f32 %v625, %v698
        %v702 = vxor.u32 %v701, 2147483648
        %v703 = vmul.f32 %v702, 1.442695
        %v704 = vpow.pop %v703
        %v705 = vadd.f32 %v704, 1.0
        %v706 = vrcp.pop %v705
        %v707 = vmul.f32 1.0, %v706
        %v708 = vadd.f32 %v698, %v463
        %710 = vrot.lane.b32.xlu0 %v708, 64
        %v711 = vpop.permute.xlu0 %710
        %v713 = vmul.f32 %v707, %v711
        %715 = vrot.lane.b32.xlu0 %v713, 64
        %v716 = vpop.permute.xlu0 %715
        %v718 = vadd.f32 %v625, %v716
        %v719 = vtanh.pop %v718
        %v720 = vsub.f32 1.0, %v707
        %722 = vrot.lane.b32.xlu0 %v719, 96
        %v723 = vpop.permute.xlu0 %722
        %v725 = vmul.f32 %v720, %v723
        %v726 = vmul.f32 %v707, %v615
        %v727 = vadd.f32 %v725, %v726
        %v728 = vstv %s623
        %vm729 = vcmp.lt.s32.totalorder %v728, %v363
        %v730 = vsel %vm729, 1, 0
        %731 = vset.pattern.permute.xlu0 0
        %732 = vperm.xlu0 %731, %v730
        %v733 = vpop.permute.xlu0 %732
        %vm734 = vcmp.eq.s32.totalorder %v733, 1
        %v735 = vsel %vm734, %v727, %v615
        %v736 = vsel %vm734, %v727, 0.0
        %738 = vrot.lane.b32.xlu0 %v736, 96
        %v739 = vpop.permute.xlu0 %738
        %s741 = scalar_lea.vmem %s347, 4
        %742 = vst.msk [vmem:[%s741] sm:$0x3] %vm501, %v739
        %s743 = sadd.s32 %s373, 3
        %s744 = scalar_lea.vmem %s321, 6
        %v745 = vld [vmem:[%s744] sm:$0x3]
        %747 = vrot.lane.b32.xlu0 %v735, 96
        %v748 = vpop.permute.xlu0 %747
        %v749 = vsel %vm376, %v748, 0
        %751 = vmatprep.subr.mxu0 0.0
        %752 = vmatpush1.msra.mxu0 %v364
        %753 = vmatprep.subr.mxu0 0.0
        %754 = vmatpush1.msra.mxu0 %v365
        %755 = vmatprep.subr.mxu0 0.0
        %756 = vmatpush1.msra.mxu0 %v366
        %757 = vmatprep.subr.mxu0 0.0
        %758 = vmatpush1.msra.mxu0 %v367
        %759 = vmatprep.subr.mxu0 0.0
        %760 = vmatpush1.msra.mxu0 0.0
        %761 = vmatprep.subr.mxu0 0.0
        %762 = vmatpush1.msra.mxu0 0.0
        %763 = vmatprep.subr.mxu0 0.0
        %764 = vmatpush1.msra.mxu0 0.0
        %765 = vmatprep.subr.mxu0 0.0
        %766 = vmatpush1.msra.mxu0 0.0
        %767 = vmatprep.subr.mxu0 0.0
        %768 = vmatpush1.msra.mxu0 0.0
        %769 = vmatprep.subr.mxu0 0.0
        %770 = vmatpush1.msra.mxu0 0.0
        %771 = vmatprep.subr.mxu0 0.0
        %772 = vmatpush1.msra.mxu0 0.0
        %773 = vmatprep.subr.mxu0 0.0
        %774 = vmatpush1.msra.mxu0 0.0
        %775 = vmatprep.subr.mxu0 0.0
        %776 = vmatpush1.msra.mxu0 0.0
        %777 = vmatprep.subr.mxu0 0.0
        %778 = vmatpush1.msra.mxu0 0.0
        %779 = vmatprep.subr.mxu0 0.0
        %780 = vmatpush1.msra.mxu0 0.0
        %781 = vmatprep.subr.mxu0 0.0
        %782 = vmatpush1.msra.mxu0 0.0
        %783 = vmatprep.subr.mxu0 0.0
        %784 = vmatpush1.msra.mxu0 0.0
        %785 = vmatprep.subr.mxu0 0.0
        %786 = vmatpush1.msra.mxu0 0.0
        %787 = vmatprep.subr.mxu0 0.0
        %788 = vmatpush1.msra.mxu0 0.0
        %789 = vmatprep.subr.mxu0 0.0
        %790 = vmatpush1.msra.mxu0 0.0
        %791 = vmatprep.subr.mxu0 0.0
        %792 = vmatpush1.msra.mxu0 0.0
        %793 = vmatprep.subr.mxu0 0.0
        %794 = vmatpush1.msra.mxu0 0.0
        %795 = vmatprep.subr.mxu0 0.0
        %796 = vmatpush1.msra.mxu0 0.0
        %797 = vmatprep.subr.mxu0 0.0
        %798 = vmatpush1.msra.mxu0 0.0
        %799 = vmatprep.subr.mxu0 0.0
        %800 = vmatpush1.msra.mxu0 0.0
        %801 = vmatprep.subr.mxu0 0.0
        %802 = vmatpush1.msra.mxu0 0.0
        %803 = vmatprep.subr.mxu0 0.0
        %804 = vmatpush1.msra.mxu0 0.0
        %805 = vmatprep.subr.mxu0 0.0
        %806 = vmatpush1.msra.mxu0 0.0
        %807 = vmatprep.subr.mxu0 0.0
        %808 = vmatpush1.msra.mxu0 0.0
        %809 = vmatprep.subr.mxu0 0.0
        %810 = vmatpush1.msra.mxu0 0.0
        %811 = vmatprep.subr.mxu0 0.0
        %812 = vmatpush1.msra.mxu0 0.0
        %813 = vmatprep.subr.mxu0 0.0
        %814 = vmatpush1.msra.mxu0 0.0
        %815 = vmatprep.mubr.f32.mxu0 0.0
        %816 = vmatmul.mubr.f32.gmra.mrb[0].mxu0 %v749
        %v817 = vpop.f32.mrb[0].mxu0
        %v818 = vadd.f32 0.0, %v817
        %v819 = vpop.f32.mrb[0].mxu0
        %820 = vdwg.mxu0
        %v821 = vadd.f32 %v745, %v818
        %v822 = vxor.u32 %v821, 2147483648
        %v823 = vmul.f32 %v822, 1.442695
        %v824 = vpow.pop %v823
        %v825 = vadd.f32 %v824, 1.0
        %v826 = vrcp.pop %v825
        %v827 = vmul.f32 1.0, %v826
        %v828 = vadd.f32 %v818, %v463
        %830 = vrot.lane.b32.xlu0 %v828, 64
        %v831 = vpop.permute.xlu0 %830
        %v833 = vmul.f32 %v827, %v831
        %835 = vrot.lane.b32.xlu0 %v833, 64
        %v836 = vpop.permute.xlu0 %835
        %v838 = vadd.f32 %v745, %v836
        %v839 = vtanh.pop %v838
        %v840 = vsub.f32 1.0, %v827
        %842 = vrot.lane.b32.xlu0 %v839, 96
        %v843 = vpop.permute.xlu0 %842
        %v845 = vmul.f32 %v840, %v843
        %v846 = vmul.f32 %v827, %v735
        %v847 = vadd.f32 %v845, %v846
        %v848 = vstv %s743
        %vm849 = vcmp.lt.s32.totalorder %v848, %v363
        %v850 = vsel %vm849, 1, 0
        %851 = vset.pattern.permute.xlu0 0
        %852 = vperm.xlu0 %851, %v850
        %v853 = vpop.permute.xlu0 %852
        %vm854 = vcmp.eq.s32.totalorder %v853, 1
        %v855 = vsel %vm854, %v847, %v735
        %v856 = vsel %vm854, %v847, 0.0
        %858 = vrot.lane.b32.xlu0 %v856, 96
        %v859 = vpop.permute.xlu0 %858
        %s861 = scalar_lea.vmem %s347, 6
        %862 = vst.msk [vmem:[%s861] sm:$0x3] %vm501, %v859
        %864 = vrot.lane.b32.xlu0 %v855, 96
        %v865 = vpop.permute.xlu0 %864
        %867 = vst.msk [vmem:[#allocation2] sm:$0x3] %vm501, %v865
        %p868 = scmp.eq.s32.totalorder %s22, 1
        // Predicated region
        $region45: #{encoder_forward.1} parent=43 // pred_check
          %p869 = pneg %p868
        $region46: #{encoder_forward.1} parent=43 // pred_check_branch
          %871 = sbr.rel (%p869) target = $region48
        $region47: #{encoder_forward.1} parent=43 // pred_region
          %872 = vst.msk [vmem:[%s356] sm:$0x3] %vm501, %v865
        $region48: #{encoder_forward.1} parent=43 // pred_fallthru
          _
      $region44: #{encoder_forward.1} parent=35 // pred_fallthru
        _
      %p873 = scmp.eq.s32.totalorder %s21, 1
      // Predicated region
      $region49: #{encoder_forward.1} parent=35 // pred_check
        %p874 = pneg %p873
      $region50: #{encoder_forward.1} parent=35 // pred_check_branch
        %876 = sbr.rel (%p874) target = $region52
      $region51: #{encoder_forward.1} parent=35 // pred_region
        %s877 = ssub.s32 1, %s22
        %s878 = smul.u32 %s877, 4
        %v879 = vld [vmem:[#allocation2] sm:$0x3]
        %s880 = sadd.s32 %s878, 3
        %s881 = scalar_lea.vmem %s321, 6
        %v882 = vld [vmem:[%s881] sm:$0x3]
        %vm883 = vcmask 261120
        %v885 = vsel %vm883, %v879, 0
        %887 = vmatprep.subr.mxu0 0.0
        %888 = vmatpush1.msra.mxu0 %v364
        %889 = vmatprep.subr.mxu0 0.0
        %890 = vmatpush1.msra.mxu0 %v365
        %891 = vmatprep.subr.mxu0 0.0
        %892 = vmatpush1.msra.mxu0 %v366
        %893 = vmatprep.subr.mxu0 0.0
        %894 = vmatpush1.msra.mxu0 %v367
        %895 = vmatprep.subr.mxu0 0.0
        %896 = vmatpush1.msra.mxu0 0.0
        %897 = vmatprep.subr.mxu0 0.0
        %898 = vmatpush1.msra.mxu0 0.0
        %899 = vmatprep.subr.mxu0 0.0
        %900 = vmatpush1.msra.mxu0 0.0
        %901 = vmatprep.subr.mxu0 0.0
        %902 = vmatpush1.msra.mxu0 0.0
        %903 = vmatprep.subr.mxu0 0.0
        %904 = vmatpush1.msra.mxu0 0.0
        %905 = vmatprep.subr.mxu0 0.0
        %906 = vmatpush1.msra.mxu0 0.0
        %907 = vmatprep.subr.mxu0 0.0
        %908 = vmatpush1.msra.mxu0 0.0
        %909 = vmatprep.subr.mxu0 0.0
        %910 = vmatpush1.msra.mxu0 0.0
        %911 = vmatprep.subr.mxu0 0.0
        %912 = vmatpush1.msra.mxu0 0.0
        %913 = vmatprep.subr.mxu0 0.0
        %914 = vmatpush1.msra.mxu0 0.0
        %915 = vmatprep.subr.mxu0 0.0
        %916 = vmatpush1.msra.mxu0 0.0
        %917 = vmatprep.subr.mxu0 0.0
        %918 = vmatpush1.msra.mxu0 0.0
        %919 = vmatprep.subr.mxu0 0.0
        %920 = vmatpush1.msra.mxu0 0.0
        %921 = vmatprep.subr.mxu0 0.0
        %922 = vmatpush1.msra.mxu0 0.0
        %923 = vmatprep.subr.mxu0 0.0
        %924 = vmatpush1.msra.mxu0 0.0
        %925 = vmatprep.subr.mxu0 0.0
        %926 = vmatpush1.msra.mxu0 0.0
        %927 = vmatprep.subr.mxu0 0.0
        %928 = vmatpush1.msra.mxu0 0.0
        %929 = vmatprep.subr.mxu0 0.0
        %930 = vmatpush1.msra.mxu0 0.0
        %931 = vmatprep.subr.mxu0 0.0
        %932 = vmatpush1.msra.mxu0 0.0
        %933 = vmatprep.subr.mxu0 0.0
        %934 = vmatpush1.msra.mxu0 0.0
        %935 = vmatprep.subr.mxu0 0.0
        %936 = vmatpush1.msra.mxu0 0.0
        %937 = vmatprep.subr.mxu0 0.0
        %938 = vmatpush1.msra.mxu0 0.0
        %939 = vmatprep.subr.mxu0 0.0
        %940 = vmatpush1.msra.mxu0 0.0
        %941 = vmatprep.subr.mxu0 0.0
        %942 = vmatpush1.msra.mxu0 0.0
        %943 = vmatprep.subr.mxu0 0.0
        %944 = vmatpush1.msra.mxu0 0.0
        %945 = vmatprep.subr.mxu0 0.0
        %946 = vmatpush1.msra.mxu0 0.0
        %947 = vmatprep.subr.mxu0 0.0
        %948 = vmatpush1.msra.mxu0 0.0
        %949 = vmatprep.subr.mxu0 0.0
        %950 = vmatpush1.msra.mxu0 0.0
        %951 = vmatprep.mubr.f32.mxu0 0.0
        %952 = vmatmul.mubr.f32.gmra.mrb[0].mxu0 %v885
        %v953 = vpop.f32.mrb[0].mxu0
        %v954 = vadd.f32 0.0, %v953
        %v955 = vpop.f32.mrb[0].mxu0
        %956 = vdwg.mxu0
        %v957 = vadd.f32 %v882, %v954
        %v958 = vxor.u32 %v957, 2147483648
        %v959 = vmul.f32 %v958, 1.442695
        %v960 = vpow.pop %v959
        %v961 = vadd.f32 %v960, 1.0
        %v962 = vrcp.pop %v961
        %v963 = vmul.f32 1.0, %v962
        %v965 = vlaneseq
        %v966 = vshrl.u32 %v965, 7
        %v967 = vsub.s32 0, %v966
        %v968 = vrot.slane %v368, %v967
        %969 = vrot.lane.b32.xlu0 %v968, 64
        %v970 = vpop.permute.xlu0 %969
        %v972 = vadd.f32 %v954, %v970
        %974 = vrot.lane.b32.xlu0 %v972, 64
        %v975 = vpop.permute.xlu0 %974
        %v977 = vmul.f32 %v963, %v975
        %979 = vrot.lane.b32.xlu0 %v977, 64
        %v980 = vpop.permute.xlu0 %979
        %v982 = vadd.f32 %v882, %v980
        %v983 = vtanh.pop %v982
        %v984 = vsub.f32 1.0, %v963
        %986 = vrot.lane.b32.xlu0 %v983, 96
        %v987 = vpop.permute.xlu0 %986
        %v989 = vmul.f32 %v984, %v987
        %990 = vrot.lane.b32.xlu0 %v879, 32
        %v991 = vpop.permute.xlu0 %990
        %v993 = vmul.f32 %v963, %v991
        %v994 = vadd.f32 %v989, %v993
        %v995 = vstv %s880
        %vm996 = vcmp.lt.s32.totalorder %v995, %v363
        %v997 = vsel %vm996, 1, 0
        %998 = vset.pattern.permute.xlu0 0
        %999 = vperm.xlu0 %998, %v997
        %v1000 = vpop.permute.xlu0 %999
        %vm1001 = vcmp.eq.s32.totalorder %v1000, 1
        %v1002 = vsel %vm1001, %v994, %v991
        %v1003 = vsel %vm1001, %v994, 0.0
        %1005 = vrot.lane.b32.xlu0 %v1003, 96
        %v1006 = vpop.permute.xlu0 %1005
        %s1008 = scalar_lea.vmem %s347, 6
        %vm1009 = vcmask 254976
        %1010 = vst.msk [vmem:[%s1008] sm:$0x3] %vm1009, %v1006
        %s1011 = sadd.s32 %s878, 2
        %s1012 = scalar_lea.vmem %s321, 4
        %v1013 = vld [vmem:[%s1012] sm:$0x3]
        %1015 = vrot.lane.b32.xlu0 %v1002, 96
        %v1016 = vpop.permute.xlu0 %1015
        %v1017 = vsel %vm883, %v1016, 0
        %1019 = vmatprep.subr.mxu0 0.0
        %1020 = vmatpush1.msra.mxu0 %v364
        %1021 = vmatprep.subr.mxu0 0.0
        %1022 = vmatpush1.msra.mxu0 %v365
        %1023 = vmatprep.subr.mxu0 0.0
        %1024 = vmatpush1.msra.mxu0 %v366
        %1025 = vmatprep.subr.mxu0 0.0
        %1026 = vmatpush1.msra.mxu0 %v367
        %1027 = vmatprep.subr.mxu0 0.0
        %1028 = vmatpush1.msra.mxu0 0.0
        %1029 = vmatprep.subr.mxu0 0.0
        %1030 = vmatpush1.msra.mxu0 0.0
        %1031 = vmatprep.subr.mxu0 0.0
        %1032 = vmatpush1.msra.mxu0 0.0
        %1033 = vmatprep.subr.mxu0 0.0
        %1034 = vmatpush1.msra.mxu0 0.0
        %1035 = vmatprep.subr.mxu0 0.0
        %1036 = vmatpush1.msra.mxu0 0.0
        %1037 = vmatprep.subr.mxu0 0.0
        %1038 = vmatpush1.msra.mxu0 0.0
        %1039 = vmatprep.subr.mxu0 0.0
        %1040 = vmatpush1.msra.mxu0 0.0
        %1041 = vmatprep.subr.mxu0 0.0
        %1042 = vmatpush1.msra.mxu0 0.0
        %1043 = vmatprep.subr.mxu0 0.0
        %1044 = vmatpush1.msra.mxu0 0.0
        %1045 = vmatprep.subr.mxu0 0.0
        %1046 = vmatpush1.msra.mxu0 0.0
        %1047 = vmatprep.subr.mxu0 0.0
        %1048 = vmatpush1.msra.mxu0 0.0
        %1049 = vmatprep.subr.mxu0 0.0
        %1050 = vmatpush1.msra.mxu0 0.0
        %1051 = vmatprep.subr.mxu0 0.0
        %1052 = vmatpush1.msra.mxu0 0.0
        %1053 = vmatprep.subr.mxu0 0.0
        %1054 = vmatpush1.msra.mxu0 0.0
        %1055 = vmatprep.subr.mxu0 0.0
        %1056 = vmatpush1.msra.mxu0 0.0
        %1057 = vmatprep.subr.mxu0 0.0
        %1058 = vmatpush1.msra.mxu0 0.0
        %1059 = vmatprep.subr.mxu0 0.0
        %1060 = vmatpush1.msra.mxu0 0.0
        %1061 = vmatprep.subr.mxu0 0.0
        %1062 = vmatpush1.msra.mxu0 0.0
        %1063 = vmatprep.subr.mxu0 0.0
        %1064 = vmatpush1.msra.mxu0 0.0
        %1065 = vmatprep.subr.mxu0 0.0
        %1066 = vmatpush1.msra.mxu0 0.0
        %1067 = vmatprep.subr.mxu0 0.0
        %1068 = vmatpush1.msra.mxu0 0.0
        %1069 = vmatprep.subr.mxu0 0.0
        %1070 = vmatpush1.msra.mxu0 0.0
        %1071 = vmatprep.subr.mxu0 0.0
        %1072 = vmatpush1.msra.mxu0 0.0
        %1073 = vmatprep.subr.mxu0 0.0
        %1074 = vmatpush1.msra.mxu0 0.0
        %1075 = vmatprep.subr.mxu0 0.0
        %1076 = vmatpush1.msra.mxu0 0.0
        %1077 = vmatprep.subr.mxu0 0.0
        %1078 = vmatpush1.msra.mxu0 0.0
        %1079 = vmatprep.subr.mxu0 0.0
        %1080 = vmatpush1.msra.mxu0 0.0
        %1081 = vmatprep.subr.mxu0 0.0
        %1082 = vmatpush1.msra.mxu0 0.0
        %1083 = vmatprep.mubr.f32.mxu0 0.0
        %1084 = vmatmul.mubr.f32.gmra.mrb[0].mxu0 %v1017
        %v1085 = vpop.f32.mrb[0].mxu0
        %v1086 = vadd.f32 0.0, %v1085
        %v1087 = vpop.f32.mrb[0].mxu0
        %1088 = vdwg.mxu0
        %v1089 = vadd.f32 %v1013, %v1086
        %v1090 = vxor.u32 %v1089, 2147483648
        %v1091 = vmul.f32 %v1090, 1.442695
        %v1092 = vpow.pop %v1091
        %v1093 = vadd.f32 %v1092, 1.0
        %v1094 = vrcp.pop %v1093
        %v1095 = vmul.f32 1.0, %v1094
        %v1096 = vadd.f32 %v1086, %v970
        %1098 = vrot.lane.b32.xlu0 %v1096, 64
        %v1099 = vpop.permute.xlu0 %1098
        %v1101 = vmul.f32 %v1095, %v1099
        %1103 = vrot.lane.b32.xlu0 %v1101, 64
        %v1104 = vpop.permute.xlu0 %1103
        %v1106 = vadd.f32 %v1013, %v1104
        %v1107 = vtanh.pop %v1106
        %v1108 = vsub.f32 1.0, %v1095
        %1110 = vrot.lane.b32.xlu0 %v1107, 96
        %v1111 = vpop.permute.xlu0 %1110
        %v1113 = vmul.f32 %v1108, %v1111
        %v1114 = vmul.f32 %v1095, %v1002
        %v1115 = vadd.f32 %v1113, %v1114
        %v1116 = vstv %s1011
        %vm1117 = vcmp.lt.s32.totalorder %v1116, %v363
        %v1118 = vsel %vm1117, 1, 0
        %1119 = vset.pattern.permute.xlu0 0
        %1120 = vperm.xlu0 %1119, %v1118
        %v1121 = vpop.permute.xlu0 %1120
        %vm1122 = vcmp.eq.s32.totalorder %v1121, 1
        %v1123 = vsel %vm1122, %v1115, %v1002
        %v1124 = vsel %vm1122, %v1115, 0.0
        %1126 = vrot.lane.b32.xlu0 %v1124, 96
        %v1127 = vpop.permute.xlu0 %1126
        %s1129 = scalar_lea.vmem %s347, 4
        %1130 = vst.msk [vmem:[%s1129] sm:$0x3] %vm1009, %v1127
        %s1131 = sadd.s32 %s878, 1
        %s1132 = scalar_lea.vmem %s321, 2
        %v1133 = vld [vmem:[%s1132] sm:$0x3]
        %1135 = vrot.lane.b32.xlu0 %v1123, 96
        %v1136 = vpop.permute.xlu0 %1135
        %v1137 = vsel %vm883, %v1136, 0
        %1139 = vmatprep.subr.mxu0 0.0
        %1140 = vmatpush1.msra.mxu0 %v364
        %1141 = vmatprep.subr.mxu0 0.0
        %1142 = vmatpush1.msra.mxu0 %v365
        %1143 = vmatprep.subr.mxu0 0.0
        %1144 = vmatpush1.msra.mxu0 %v366
        %1145 = vmatprep.subr.mxu0 0.0
        %1146 = vmatpush1.msra.mxu0 %v367
        %1147 = vmatprep.subr.mxu0 0.0
        %1148 = vmatpush1.msra.mxu0 0.0
        %1149 = vmatprep.subr.mxu0 0.0
        %1150 = vmatpush1.msra.mxu0 0.0
        %1151 = vmatprep.subr.mxu0 0.0
        %1152 = vmatpush1.msra.mxu0 0.0
        %1153 = vmatprep.subr.mxu0 0.0
        %1154 = vmatpush1.msra.mxu0 0.0
        %1155 = vmatprep.subr.mxu0 0.0
        %1156 = vmatpush1.msra.mxu0 0.0
        %1157 = vmatprep.subr.mxu0 0.0
        %1158 = vmatpush1.msra.mxu0 0.0
        %1159 = vmatprep.subr.mxu0 0.0
        %1160 = vmatpush1.msra.mxu0 0.0
        %1161 = vmatprep.subr.mxu0 0.0
        %1162 = vmatpush1.msra.mxu0 0.0
        %1163 = vmatprep.subr.mxu0 0.0
        %1164 = vmatpush1.msra.mxu0 0.0
        %1165 = vmatprep.subr.mxu0 0.0
        %1166 = vmatpush1.msra.mxu0 0.0
        %1167 = vmatprep.subr.mxu0 0.0
        %1168 = vmatpush1.msra.mxu0 0.0
        %1169 = vmatprep.subr.mxu0 0.0
        %1170 = vmatpush1.msra.mxu0 0.0
        %1171 = vmatprep.subr.mxu0 0.0
        %1172 = vmatpush1.msra.mxu0 0.0
        %1173 = vmatprep.subr.mxu0 0.0
        %1174 = vmatpush1.msra.mxu0 0.0
        %1175 = vmatprep.subr.mxu0 0.0
        %1176 = vmatpush1.msra.mxu0 0.0
        %1177 = vmatprep.subr.mxu0 0.0
        %1178 = vmatpush1.msra.mxu0 0.0
        %1179 = vmatprep.subr.mxu0 0.0
        %1180 = vmatpush1.msra.mxu0 0.0
        %1181 = vmatprep.subr.mxu0 0.0
        %1182 = vmatpush1.msra.mxu0 0.0
        %1183 = vmatprep.subr.mxu0 0.0
        %1184 = vmatpush1.msra.mxu0 0.0
        %1185 = vmatprep.subr.mxu0 0.0
        %1186 = vmatpush1.msra.mxu0 0.0
        %1187 = vmatprep.subr.mxu0 0.0
        %1188 = vmatpush1.msra.mxu0 0.0
        %1189 = vmatprep.subr.mxu0 0.0
        %1190 = vmatpush1.msra.mxu0 0.0
        %1191 = vmatprep.subr.mxu0 0.0
        %1192 = vmatpush1.msra.mxu0 0.0
        %1193 = vmatprep.subr.mxu0 0.0
        %1194 = vmatpush1.msra.mxu0 0.0
        %1195 = vmatprep.subr.mxu0 0.0
        %1196 = vmatpush1.msra.mxu0 0.0
        %1197 = vmatprep.subr.mxu0 0.0
        %1198 = vmatpush1.msra.mxu0 0.0
        %1199 = vmatprep.subr.mxu0 0.0
        %1200 = vmatpush1.msra.mxu0 0.0
        %1201 = vmatprep.subr.mxu0 0.0
        %1202 = vmatpush1.msra.mxu0 0.0
        %1203 = vmatprep.mubr.f32.mxu0 0.0
        %1204 = vmatmul.mubr.f32.gmra.mrb[0].mxu0 %v1137
        %v1205 = vpop.f32.mrb[0].mxu0
        %v1206 = vadd.f32 0.0, %v1205
        %v1207 = vpop.f32.mrb[0].mxu0
        %1208 = vdwg.mxu0
        %v1209 = vadd.f32 %v1133, %v1206
        %v1210 = vxor.u32 %v1209, 2147483648
        %v1211 = vmul.f32 %v1210, 1.442695
        %v1212 = vpow.pop %v1211
        %v1213 = vadd.f32 %v1212, 1.0
        %v1214 = vrcp.pop %v1213
        %v1215 = vmul.f32 1.0, %v1214
        %v1216 = vadd.f32 %v1206, %v970
        %1218 = vrot.lane.b32.xlu0 %v1216, 64
        %v1219 = vpop.permute.xlu0 %1218
        %v1221 = vmul.f32 %v1215, %v1219
        %1223 = vrot.lane.b32.xlu0 %v1221, 64
        %v1224 = vpop.permute.xlu0 %1223
        %v1226 = vadd.f32 %v1133, %v1224
        %v1227 = vtanh.pop %v1226
        %v1228 = vsub.f32 1.0, %v1215
        %1230 = vrot.lane.b32.xlu0 %v1227, 96
        %v1231 = vpop.permute.xlu0 %1230
        %v1233 = vmul.f32 %v1228, %v1231
        %v1234 = vmul.f32 %v1215, %v1123
        %v1235 = vadd.f32 %v1233, %v1234
        %v1236 = vstv %s1131
        %vm1237 = vcmp.lt.s32.totalorder %v1236, %v363
        %v1238 = vsel %vm1237, 1, 0
        %1239 = vset.pattern.permute.xlu0 0
        %1240 = vperm.xlu0 %1239, %v1238
        %v1241 = vpop.permute.xlu0 %1240
        %vm1242 = vcmp.eq.s32.totalorder %v1241, 1
        %v1243 = vsel %vm1242, %v1235, %v1123
        %v1244 = vsel %vm1242, %v1235, 0.0
        %1246 = vrot.lane.b32.xlu0 %v1244, 96
        %v1247 = vpop.permute.xlu0 %1246
        %s1249 = scalar_lea.vmem %s347, 2
        %1250 = vst.msk [vmem:[%s1249] sm:$0x3] %vm1009, %v1247
        %v1251 = vld [vmem:[%s321] sm:$0x3]
        %1253 = vrot.lane.b32.xlu0 %v1243, 96
        %v1254 = vpop.permute.xlu0 %1253
        %v1255 = vsel %vm883, %v1254, 0
        %1257 = vmatprep.subr.mxu0 0.0
        %1258 = vmatpush1.msra.mxu0 %v364
        %1259 = vmatprep.subr.mxu0 0.0
        %1260 = vmatpush1.msra.mxu0 %v365
        %1261 = vmatprep.subr.mxu0 0.0
        %1262 = vmatpush1.msra.mxu0 %v366
        %1263 = vmatprep.subr.mxu0 0.0
        %1264 = vmatpush1.msra.mxu0 %v367
        %1265 = vmatprep.subr.mxu0 0.0
        %1266 = vmatpush1.msra.mxu0 0.0
        %1267 = vmatprep.subr.mxu0 0.0
        %1268 = vmatpush1.msra.mxu0 0.0
        %1269 = vmatprep.subr.mxu0 0.0
        %1270 = vmatpush1.msra.mxu0 0.0
        %1271 = vmatprep.subr.mxu0 0.0
        %1272 = vmatpush1.msra.mxu0 0.0
        %1273 = vmatprep.subr.mxu0 0.0
        %1274 = vmatpush1.msra.mxu0 0.0
        %1275 = vmatprep.subr.mxu0 0.0
        %1276 = vmatpush1.msra.mxu0 0.0
        %1277 = vmatprep.subr.mxu0 0.0
        %1278 = vmatpush1.msra.mxu0 0.0
        %1279 = vmatprep.subr.mxu0 0.0
        %1280 = vmatpush1.msra.mxu0 0.0
        %1281 = vmatprep.subr.mxu0 0.0
        %1282 = vmatpush1.msra.mxu0 0.0
        %1283 = vmatprep.subr.mxu0 0.0
        %1284 = vmatpush1.msra.mxu0 0.0
        %1285 = vmatprep.subr.mxu0 0.0
        %1286 = vmatpush1.msra.mxu0 0.0
        %1287 = vmatprep.subr.mxu0 0.0
        %1288 = vmatpush1.msra.mxu0 0.0
        %1289 = vmatprep.subr.mxu0 0.0
        %1290 = vmatpush1.msra.mxu0 0.0
        %1291 = vmatprep.subr.mxu0 0.0
        %1292 = vmatpush1.msra.mxu0 0.0
        %1293 = vmatprep.subr.mxu0 0.0
        %1294 = vmatpush1.msra.mxu0 0.0
        %1295 = vmatprep.subr.mxu0 0.0
        %1296 = vmatpush1.msra.mxu0 0.0
        %1297 = vmatprep.subr.mxu0 0.0
        %1298 = vmatpush1.msra.mxu0 0.0
        %1299 = vmatprep.subr.mxu0 0.0
        %1300 = vmatpush1.msra.mxu0 0.0
        %1301 = vmatprep.subr.mxu0 0.0
        %1302 = vmatpush1.msra.mxu0 0.0
        %1303 = vmatprep.subr.mxu0 0.0
        %1304 = vmatpush1.msra.mxu0 0.0
        %1305 = vmatprep.subr.mxu0 0.0
        %1306 = vmatpush1.msra.mxu0 0.0
        %1307 = vmatprep.subr.mxu0 0.0
        %1308 = vmatpush1.msra.mxu0 0.0
        %1309 = vmatprep.subr.mxu0 0.0
        %1310 = vmatpush1.msra.mxu0 0.0
        %1311 = vmatprep.subr.mxu0 0.0
        %1312 = vmatpush1.msra.mxu0 0.0
        %1313 = vmatprep.subr.mxu0 0.0
        %1314 = vmatpush1.msra.mxu0 0.0
        %1315 = vmatprep.subr.mxu0 0.0
        %1316 = vmatpush1.msra.mxu0 0.0
        %1317 = vmatprep.subr.mxu0 0.0
        %1318 = vmatpush1.msra.mxu0 0.0
        %1319 = vmatprep.subr.mxu0 0.0
        %1320 = vmatpush1.msra.mxu0 0.0
        %1321 = vmatprep.mubr.f32.mxu0 0.0
        %1322 = vmatmul.mubr.f32.gmra.mrb[0].mxu0 %v1255
        %v1323 = vpop.f32.mrb[0].mxu0
        %v1324 = vadd.f32 0.0, %v1323
        %v1325 = vpop.f32.mrb[0].mxu0
        %1326 = vdwg.mxu0
        %v1327 = vadd.f32 %v1251, %v1324
        %v1328 = vxor.u32 %v1327, 2147483648
        %v1329 = vmul.f32 %v1328, 1.442695
        %v1330 = vpow.pop %v1329
        %v1331 = vadd.f32 %v1330, 1.0
        %v1332 = vrcp.pop %v1331
        %v1333 = vmul.f32 1.0, %v1332
        %v1334 = vadd.f32 %v1324, %v970
        %1336 = vrot.lane.b32.xlu0 %v1334, 64
        %v1337 = vpop.permute.xlu0 %1336
        %v1339 = vmul.f32 %v1333, %v1337
        %1341 = vrot.lane.b32.xlu0 %v1339, 64
        %v1342 = vpop.permute.xlu0 %1341
        %v1344 = vadd.f32 %v1251, %v1342
        %v1345 = vtanh.pop %v1344
        %v1346 = vsub.f32 1.0, %v1333
        %1348 = vrot.lane.b32.xlu0 %v1345, 96
        %v1349 = vpop.permute.xlu0 %1348
        %v1351 = vmul.f32 %v1346, %v1349
        %v1352 = vmul.f32 %v1333, %v1243
        %v1353 = vadd.f32 %v1351, %v1352
        %v1354 = vstv %s878
        %vm1355 = vcmp.lt.s32.totalorder %v1354, %v363
        %v1356 = vsel %vm1355, 1, 0
        %1357 = vset.pattern.permute.xlu0 0
        %1358 = vperm.xlu0 %1357, %v1356
        %v1359 = vpop.permute.xlu0 %1358
        %vm1360 = vcmp.eq.s32.totalorder %v1359, 1
        %v1361 = vsel %vm1360, %v1353, %v1243
        %v1362 = vsel %vm1360, %v1353, 0.0
        %1364 = vrot.lane.b32.xlu0 %v1362, 96
        %v1365 = vpop.permute.xlu0 %1364
        %1367 = vst.msk [vmem:[%s347] sm:$0x3] %vm1009, %v1365
        %1369 = vrot.lane.b32.xlu0 %v1361, 96
        %v1370 = vpop.permute.xlu0 %1369
        %1372 = vst.msk [vmem:[#allocation2] sm:$0x3] %vm1009, %v1370
        %p1373 = scmp.eq.s32.totalorder %s22, 1
        // Predicated region
        $region53: #{encoder_forward.1} parent=51 // pred_check
          %p1374 = pneg %p1373
        $region54: #{encoder_forward.1} parent=51 // pred_check_branch
          %1376 = sbr.rel (%p1374) target = $region56
        $region55: #{encoder_forward.1} parent=51 // pred_region
          %1377 = vst.msk [vmem:[%s356] sm:$0x3] %vm1009, %v1370
        $region56: #{encoder_forward.1} parent=51 // pred_fallthru
          _
      $region52: #{encoder_forward.1} parent=35 // pred_fallthru
        _
      %s1378 = smul.u32 %s22, 2
      %s1379 = ssub.s32 1, %s1378
      %s1380 = smul.u32 %s21, %s1379
      %s1381 = sadd.s32 %s22, %s1380
      %s1382 = smul.u32 4, %s1381
      %p1383 = scmp.lt.s32.totalorder %s21, 1
      %s1384 = scalar_select %p1383, %s21, 1
      %p1385 = scmp.lt.s32.totalorder %s1382, 7
      %s1386 = scalar_select %p1385, %s1382, 7
      %s1387 = smul.addr %s1384, 8
      %s1388 = sadd.s32 %s1386, %s1387
      %s1389 = smul.addr %s1388, 2
      %s1390 = scalar_lea.vmem %s4, %s1389
      %p1391 = scmp.lt.s32.totalorder %s21, 1
      %s1392 = scalar_select %p1391, %s21, 1
      %s1393 = smul.addr %s1392, 2
      %s1394 = scalar_lea.vmem %s5, %s1393
      // Predicated region
      $region57: #{encoder_forward.1} parent=35 // pred_check
        %p1395 = pneg %p166
      $region58: #{encoder_forward.1} parent=35 // pred_check_branch
        %1397 = sbr.rel (%p1395) target = $region60
      $region59: #{encoder_forward.1} parent=35 // pred_region
        %s1398 = smul.u32 %s22, 2
        %s1399 = ssub.s32 1, %s1398
        %s1400 = smul.u32 %s21, %s1399
        %s1401 = sadd.s32 %s22, %s1400
        %s1402 = smul.u32 4, %s1401
      $region60: #{encoder_forward.1} parent=35 // pred_fallthru
        _
      // Predicated region
      $region61: #{encoder_forward.1} parent=35 // pred_check
        %p1403 = pneg %p192
      $region62: #{encoder_forward.1} parent=35 // pred_check_branch
        %1405 = sbr.rel (%p1403) target = $region64
      $region63: #{encoder_forward.1} parent=35 // pred_region
        _
      $region64: #{encoder_forward.1} parent=35 // pred_fallthru
        _
    $region36: #{encoder_forward.1} parent=5 // pred_fallthru
      _
    %p1406 = scmp.le.s32.totalorder 2, %s12
    // Predicated region
    $region65: #{encoder_forward.1} parent=5 // pred_check
      %p1407 = pneg %p1406
    $region66: #{encoder_forward.1} parent=5 // pred_check_branch
      %1409 = sbr.rel (%p1407) target = $region68
    $region67: #{encoder_forward.1} parent=5 // pred_region
      %s1410 = ssub.s32 %s12, 2
      // Predicated region
      $region69: #{encoder_forward.1} parent=67 // pred_check
        %p1411 = pneg %p172
      $region70: #{encoder_forward.1} parent=67 // pred_check_branch
        %1413 = sbr.rel (%p1411) target = $region72
      $region71: #{encoder_forward.1} parent=67 // pred_region
        %s1414 = smul.u32 %s24, 2
        %s1415 = ssub.s32 1, %s1414
        %s1416 = smul.u32 %s23, %s1415
        %s1417 = sadd.s32 %s24, %s1416
        %s1418 = smul.u32 4, %s1417
        %p1419 = scmp.lt.s32.totalorder %s23, 1
        %s1420 = scalar_select %p1419, %s23, 1
        %p1421 = scmp.lt.s32.totalorder %s1418, 7
        %s1422 = scalar_select %p1421, %s1418, 7
        %s1423 = smul.addr %s1420, 8
        %s1424 = sadd.s32 %s1422, %s1423
        %s1425 = smul.addr %s1424, 2
        %s1426 = scalar_lea.vmem %s4, %s1425
      $region72: #{encoder_forward.1} parent=67 // pred_fallthru
        _
      // Predicated region
      $region73: #{encoder_forward.1} parent=67 // pred_check
        %p1427 = pneg %p198
      $region74: #{encoder_forward.1} parent=67 // pred_check_branch
        %1429 = sbr.rel (%p1427) target = $region76
      $region75: #{encoder_forward.1} parent=67 // pred_region
        %p1430 = scmp.lt.s32.totalorder %s23, 1
        %s1431 = scalar_select %p1430, %s23, 1
        %s1432 = smul.addr %s1431, 2
        %s1433 = scalar_lea.vmem %s5, %s1432
      $region76: #{encoder_forward.1} parent=67 // pred_fallthru
        _
    $region68: #{encoder_forward.1} parent=5 // pred_fallthru
      _
  $region6: #{encoder_forward.1} parent=0 // loop_footer
    %s16 = sadd.s32 1, %s12
  $region7: #{encoder_forward.1} parent=0 // loop_footer_branch
    %11 = sbr.rel target = $region3
  $region8: #{encoder_forward.1} parent=0 // loop_exit
    _

</llo_original>
